<compile_context>
chip_gen: v7x
topology: tpu7x:2x2x1
jax: 0.10.0
libtpu: 0.0.40
codegen_flags: <defaults>
</compile_context>

<pallas_src>
import functools
import math

import jax
import jax.numpy as jnp
from jax.experimental import pallas as pl
from jax.experimental.pallas import tpu as pltpu

_LANES = 128


# ----------------------------------------------------------------------------
# Module "__init__" glue (plain JAX math, deterministic, no checkpoint)
# ----------------------------------------------------------------------------
def generate_vol_bins(start, end, nbins, dim=3):
    """3D shell volumes for each bin and total spherical volume V."""
    assert dim == 3
    bins = jnp.linspace(start, end, nbins + 1, dtype=jnp.float32)           # (nbins+1,)
    vol_bins = (4.0 * math.pi / 3.0) * (bins[1:] ** 3 - bins[:-1] ** 3)     # (nbins,)
    V = (4.0 / 3.0) * math.pi * float(end) ** 3
    return V, vol_bins, bins


def _device_kind():
    try:
        return jax.devices()[0].device_kind.lower()
    except Exception:
        return ""


def _default_num_cores():
    # v7x has 2 TensorCores per chip: a leading "parallel" grid axis lets each
    # core accumulate a private partial histogram.  1 elsewhere (no-op).
    return 2 if "v7" in _device_kind() else 1


def _supports_bf16_exp():
    # v6e / v7x EUP+VPU have a bf16 path (~2x transcendental throughput).
    # v5e and older have no bf16 EUP, so the casts would only add cost.
    kind = _device_kind()
    return ("v6" in kind) or ("v7" in kind)


# ----------------------------------------------------------------------------
# Pallas kernel: Gaussian smearing histogram, accumulated over distance tiles
# ----------------------------------------------------------------------------
def _rdf_kernel(d_ref, off_ref, out_ref, *, coeff, rows, exp_dtype):
    """Accumulate sum_i exp(coeff * (d_i - offset_k)^2) into out_ref[k, lane_slot].

    d_ref   : (rows, 128)  lane-dense distance tile (128 distances per row)
    off_ref : (NB, 1)      Gaussian centers, bins on the sublane axis
    out_ref : (NB, 128)    per-(bin, lane-slot) partial histogram, resident
                           across the trailing "arbitrary" grid axis (P3 pattern)
    """
    i = pl.program_id(1)

    @pl.when(i == 0)
    def _init():
        out_ref[...] = jnp.zeros_like(out_ref)

    # Static (fully unrolled) loop over the 128-wide distance rows of this tile
    # keeps vreg live ranges bounded to one (NB, 128) slab per iteration.
    for r in range(rows):
        off = off_ref[...]                      # (NB, 1)   f32 (reload: avoids pinning vregs)
        drow = d_ref[pl.ds(r, 1), :]            # (1, 128)  f32, 128 distances on lanes
        diff = drow - off                       # (NB, 128) outer difference via broadcast
        z = (coeff * diff) * diff               # f32 on the VPU (has slack)
        g = jnp.exp(z.astype(exp_dtype))        # EUP exp: bf16 on v6e/v7x (~2x), f32 on v5e
        out_ref[...] += g.astype(jnp.float32)   # f32 accumulation into resident output block


def differentiable_rdf(running_dists, offsets, vol_bins, V, gaussian_width,
                       *, num_cores=None, use_bf16_exp=None, max_rows_per_tile=32):
    """JAX/Pallas equivalent of DifferentiableRDF.forward(running_dists)."""
    dists = jnp.concatenate([jnp.reshape(d, (-1,)) for d in running_dists]).astype(jnp.float32)
    n = int(dists.shape[0])
    nbins = int(offsets.shape[0])

    if num_cores is None:
        num_cores = _default_num_cores()
    if use_bf16_exp is None:
        use_bf16_exp = _supports_bf16_exp()
    exp_dtype = jnp.bfloat16 if use_bf16_exp else jnp.float32

    # Rows (of 128 distances) per grid step: small inputs stay small (less padded
    # work), large inputs use bigger tiles to amortise the ~0.35us/step overhead.
    rows = 8
    cand = 16
    while cand <= max_rows_per_tile and n >= num_cores * _LANES * cand:
        rows = cand
        cand *= 2

    # Pad distances to a whole number of (num_cores x rows x 128) tiles.  The pad
    # value is a huge distance whose Gaussian weight underflows to exactly 0.0
    # (in both f32 and bf16), so padded slots contribute nothing.
    chunk = num_cores * rows * _LANES
    n_pad = max(chunk, pl.cdiv(n, chunk) * chunk)
    dists = jnp.pad(dists, (0, n_pad - n), constant_values=jnp.float32(1e6))
    rows_total = n_pad // (num_cores * _LANES)
    d3 = dists.reshape(num_cores, rows_total, _LANES)          # lane-dense layout

    # Bins live on the sublane axis -> pad nbins to a multiple of 8.  Padded bin
    # centers are far away (-1e6) so their counts are exactly 0 and get sliced off.
    nb_pad = pl.cdiv(nbins, 8) * 8
    offs = jnp.asarray(offsets, jnp.float32).reshape(-1)
    offs = jnp.pad(offs, (0, nb_pad - nbins), constant_values=jnp.float32(-1e6))
    offs_col = offs.reshape(nb_pad, 1)

    coeff = -0.5 / float(gaussian_width) ** 2
    grid = (num_cores, rows_total // rows)

    raw = pl.pallas_call(
        functools.partial(_rdf_kernel, coeff=coeff, rows=rows, exp_dtype=exp_dtype),
        out_shape=jax.ShapeDtypeStruct((num_cores, nb_pad, _LANES), jnp.float32),
        grid_spec=pltpu.PrefetchScalarGridSpec(
            num_scalar_prefetch=0,
            grid=grid,
            in_specs=[
                # lane-dense distance tile: dense DMA, no 128x lane padding in VMEM
                pl.BlockSpec((None, rows, _LANES), lambda p, i: (p, i, 0)),
                # Gaussian centers (constant across the grid)
                pl.BlockSpec((nb_pad, 1), lambda p, i: (0, 0)),
            ],
            # per-core partial histogram, resident across the reduction axis
            out_specs=pl.BlockSpec((None, nb_pad, _LANES), lambda p, i: (p, 0, 0)),
        ),
        compiler_params=pltpu.CompilerParams(
            dimension_semantics=("parallel", "arbitrary")),
    )(d3, offs_col)

    # Tiny epilogue in plain JAX: combine per-core / per-lane partials, normalise
    # (guarded against empty / all-padding input), divide by the shell volumes.
    count = jnp.sum(raw, axis=(0, 2))[:nbins]                  # (nbins,)
    norm = jnp.maximum(jnp.sum(count), jnp.float32(jnp.finfo(jnp.float32).tiny))
    gr = (count / norm) / (jnp.asarray(vol_bins, jnp.float32) / jnp.float32(V))
    return gr


# ----------------------------------------------------------------------------
# Example run
# ----------------------------------------------------------------------------
if __name__ == "__main__":
    # Synthetic "params": box / dr chosen so nbins == 128.
    box = 6.4
    dr = 0.05
    gaussian_width = 0.1
    nbins = int(box / dr)                                      # 128

    V, vol_bins, bins = generate_vol_bins(0.0, box, nbins, dim=3)
    # GaussianSmearing(start=0, stop=bins[-1], n_gaussians=nbins) centers:
    offsets = jnp.linspace(0.0, float(bins[-1]), nbins, dtype=jnp.float32)

    # running_dists: a list of distance tensors (as produced by an MD loop).
    key = jax.random.PRNGKey(0)
    keys = jax.random.split(key, 3)
    sizes = (500, 700, 300)
    running_dists = [
        jax.random.uniform(k, (s,), minval=0.05, maxval=box, dtype=jnp.float32)
        for k, s in zip(keys, sizes)
    ]

    # Pure-JAX reference of the exact PyTorch forward semantics.
    d = jnp.concatenate([x.reshape(-1) for x in running_dists])[:, None]
    count = jnp.exp(-0.5 * (d - offsets[None, :]) ** 2 / gaussian_width ** 2).sum(0)
    ref = (count / count.sum()) / (vol_bins / V)

    # 1) f32 path: exact semantics, tight tolerance (validates kernel structure).
    gr32 = differentiable_rdf(running_dists, offsets, vol_bins, V, gaussian_width,
                              use_bf16_exp=False)
    gr32 = jax.block_until_ready(gr32)
    assert gr32.shape == (nbins,) and gr32.dtype == jnp.float32
    assert jnp.allclose(gr32, ref, rtol=2e-4, atol=1e-5), "Pallas RDF (f32) mismatch vs reference"

    # 2) auto path: bf16 exp on v6e/v7x (~1% relative), both TensorCores on v7x.
    gr_fast = differentiable_rdf(running_dists, offsets, vol_bins, V, gaussian_width)
    gr_fast = jax.block_until_ready(gr_fast)
    assert gr_fast.shape == (nbins,) and gr_fast.dtype == jnp.float32
    assert jnp.allclose(gr_fast, ref, rtol=1e-1, atol=1e-3), "Pallas RDF (fast) mismatch vs reference"

    print("KERNEL_OK")
</pallas_src>

<mosaic_0001>
module attributes {stable_mosaic.version = 11 : i64} {
  func.func @_rdf_kernel(%arg0: i32, %arg1: i32, %arg2: memref<1x8x128xf32, #tpu.memory_space<vmem>>, %arg3: memref<128x1xf32, #tpu.memory_space<vmem>>, %arg4: memref<1x128x128xf32, #tpu.memory_space<vmem>>) attributes {dimension_semantics = [#tpu.dimension_semantics<parallel>, #tpu.dimension_semantics<arbitrary>], iteration_bounds = array<i64: 1, 2>, scalar_prefetch = 0 : i64, scratch_operands = 0 : i64, tpu.core_type = #tpu.core_type<tc>, window_params = [{transform_indices = @transform_0, window_bounds = array<i64: 1, 8, 128>}, {pipeline_mode = #tpu.pipeline_mode<synchronous>, transform_indices = @transform_1, window_bounds = array<i64: 128, 1>}, {transform_indices = @transform_2, window_bounds = array<i64: 1, 128, 128>}]} {
    %c0_i32 = arith.constant 0 : i32
    %0 = arith.cmpi eq, %arg1, %c0_i32 : i32
    %1 = arith.extui %0 : i1 to i32
    %c0_i32_0 = arith.constant 0 : i32
    %2 = arith.cmpi ne, %1, %c0_i32_0 : i32
    scf.if %2 {
      %cst_88 = arith.constant 0.000000e+00 : f32
      %131 = vector.broadcast %cst_88 : f32 to vector<128x128xf32>
      %c0_89 = arith.constant 0 : index
      %c0_90 = arith.constant 0 : index
      %c0_91 = arith.constant 0 : index
      %132 = vector.load %arg4[%c0_89, %c0_90, %c0_91] : memref<1x128x128xf32, #tpu.memory_space<vmem>>, vector<1x128x128xf32>
      %133 = vector.shape_cast %132 : vector<1x128x128xf32> to vector<128x128xf32>
      %134 = vector.shape_cast %131 : vector<128x128xf32> to vector<1x128x128xf32>
      tpu.vector_store %arg4[%c0_89, %c0_90, %c0_91], %134 {strides = array<i32>} : memref<1x128x128xf32, #tpu.memory_space<vmem>>, vector<1x128x128xf32>,
    } else {
    }
    %c0 = arith.constant 0 : index
    %c0_1 = arith.constant 0 : index
    %3 = vector.load %arg3[%c0, %c0_1] : memref<128x1xf32, #tpu.memory_space<vmem>>, vector<128x1xf32>
    %c0_2 = arith.constant 0 : index
    %c0_3 = arith.constant 0 : index
    %c0_4 = arith.constant 0 : index
    %4 = vector.load %arg2[%c0_2, %c0_3, %c0_4] : memref<1x8x128xf32, #tpu.memory_space<vmem>>, vector<1x1x128xf32>
    %5 = vector.shape_cast %4 : vector<1x1x128xf32> to vector<1x128xf32>
    %6 = vector.broadcast %5 : vector<1x128xf32> to vector<128x128xf32>
    %7 = vector.broadcast %3 : vector<128x1xf32> to vector<128x128xf32>
    %8 = arith.subf %6, %7 : vector<128x128xf32>
    %cst = arith.constant -5.000000e+01 : f32
    %9 = vector.broadcast %cst : f32 to vector<128x128xf32>
    %10 = arith.mulf %9, %8 : vector<128x128xf32>
    %11 = arith.mulf %10, %8 : vector<128x128xf32>
    %12 = math.exp %11 : vector<128x128xf32>
    %c0_5 = arith.constant 0 : index
    %c0_6 = arith.constant 0 : index
    %c0_7 = arith.constant 0 : index
    %13 = vector.load %arg4[%c0_5, %c0_6, %c0_7] : memref<1x128x128xf32, #tpu.memory_space<vmem>>, vector<1x128x128xf32>
    %14 = vector.shape_cast %13 : vector<1x128x128xf32> to vector<128x128xf32>
    %15 = arith.addf %14, %12 : vector<128x128xf32>
    %c0_8 = arith.constant 0 : index
    %c0_9 = arith.constant 0 : index
    %c0_10 = arith.constant 0 : index
    %16 = vector.load %arg4[%c0_8, %c0_9, %c0_10] : memref<1x128x128xf32, #tpu.memory_space<vmem>>, vector<1x128x128xf32>
    %17 = vector.shape_cast %16 : vector<1x128x128xf32> to vector<128x128xf32>
    %18 = vector.shape_cast %15 : vector<128x128xf32> to vector<1x128x128xf32>
    tpu.vector_store %arg4[%c0_8, %c0_9, %c0_10], %18 {strides = array<i32>} : memref<1x128x128xf32, #tpu.memory_space<vmem>>, vector<1x128x128xf32>,
    %c0_11 = arith.constant 0 : index
    %c0_12 = arith.constant 0 : index
    %19 = vector.load %arg3[%c0_11, %c0_12] : memref<128x1xf32, #tpu.memory_space<vmem>>, vector<128x1xf32>
    %c0_13 = arith.constant 0 : index
    %c1 = arith.constant 1 : index
    %c0_14 = arith.constant 0 : index
    %20 = vector.load %arg2[%c0_13, %c1, %c0_14] : memref<1x8x128xf32, #tpu.memory_space<vmem>>, vector<1x1x128xf32>
    %21 = vector.shape_cast %20 : vector<1x1x128xf32> to vector<1x128xf32>
    %22 = vector.broadcast %21 : vector<1x128xf32> to vector<128x128xf32>
    %23 = vector.broadcast %19 : vector<128x1xf32> to vector<128x128xf32>
    %24 = arith.subf %22, %23 : vector<128x128xf32>
    %cst_15 = arith.constant -5.000000e+01 : f32
    %25 = vector.broadcast %cst_15 : f32 to vector<128x128xf32>
    %26 = arith.mulf %25, %24 : vector<128x128xf32>
    %27 = arith.mulf %26, %24 : vector<128x128xf32>
    %28 = math.exp %27 : vector<128x128xf32>
    %c0_16 = arith.constant 0 : index
    %c0_17 = arith.constant 0 : index
    %c0_18 = arith.constant 0 : index
    %29 = vector.load %arg4[%c0_16, %c0_17, %c0_18] : memref<1x128x128xf32, #tpu.memory_space<vmem>>, vector<1x128x128xf32>
    %30 = vector.shape_cast %29 : vector<1x128x128xf32> to vector<128x128xf32>
    %31 = arith.addf %30, %28 : vector<128x128xf32>
    %c0_19 = arith.constant 0 : index
    %c0_20 = arith.constant 0 : index
    %c0_21 = arith.constant 0 : index
    %32 = vector.load %arg4[%c0_19, %c0_20, %c0_21] : memref<1x128x128xf32, #tpu.memory_space<vmem>>, vector<1x128x128xf32>
    %33 = vector.shape_cast %32 : vector<1x128x128xf32> to vector<128x128xf32>
    %34 = vector.shape_cast %31 : vector<128x128xf32> to vector<1x128x128xf32>
    tpu.vector_store %arg4[%c0_19, %c0_20, %c0_21], %34 {strides = array<i32>} : memref<1x128x128xf32, #tpu.memory_space<vmem>>, vector<1x128x128xf32>,
    %c0_22 = arith.constant 0 : index
    %c0_23 = arith.constant 0 : index
    %35 = vector.load %arg3[%c0_22, %c0_23] : memref<128x1xf32, #tpu.memory_space<vmem>>, vector<128x1xf32>
    %c0_24 = arith.constant 0 : index
    %c2 = arith.constant 2 : index
    %c0_25 = arith.constant 0 : index
    %36 = vector.load %arg2[%c0_24, %c2, %c0_25] : memref<1x8x128xf32, #tpu.memory_space<vmem>>, vector<1x1x128xf32>
    %37 = vector.shape_cast %36 : vector<1x1x128xf32> to vector<1x128xf32>
    %38 = vector.broadcast %37 : vector<1x128xf32> to vector<128x128xf32>
    %39 = vector.broadcast %35 : vector<128x1xf32> to vector<128x128xf32>
    %40 = arith.subf %38, %39 : vector<128x128xf32>
    %cst_26 = arith.constant -5.000000e+01 : f32
    %41 = vector.broadcast %cst_26 : f32 to vector<128x128xf32>
    %42 = arith.mulf %41, %40 : vector<128x128xf32>
    %43 = arith.mulf %42, %40 : vector<128x128xf32>
    %44 = math.exp %43 : vector<128x128xf32>
    %c0_27 = arith.constant 0 : index
    %c0_28 = arith.constant 0 : index
    %c0_29 = arith.constant 0 : index
    %45 = vector.load %arg4[%c0_27, %c0_28, %c0_29] : memref<1x128x128xf32, #tpu.memory_space<vmem>>, vector<1x128x128xf32>
    %46 = vector.shape_cast %45 : vector<1x128x128xf32> to vector<128x128xf32>
    %47 = arith.addf %46, %44 : vector<128x128xf32>
    %c0_30 = arith.constant 0 : index
    %c0_31 = arith.constant 0 : index
    %c0_32 = arith.constant 0 : index
    %48 = vector.load %arg4[%c0_30, %c0_31, %c0_32] : memref<1x128x128xf32, #tpu.memory_space<vmem>>, vector<1x128x128xf32>
    %49 = vector.shape_cast %48 : vector<1x128x128xf32> to vector<128x128xf32>
    %50 = vector.shape_cast %47 : vector<128x128xf32> to vector<1x128x128xf32>
    tpu.vector_store %arg4[%c0_30, %c0_31, %c0_32], %50 {strides = array<i32>} : memref<1x128x128xf32, #tpu.memory_space<vmem>>, vector<1x128x128xf32>,
    %c0_33 = arith.constant 0 : index
    %c0_34 = arith.constant 0 : index
    %51 = vector.load %arg3[%c0_33, %c0_34] : memref<128x1xf32, #tpu.memory_space<vmem>>, vector<128x1xf32>
    %c0_35 = arith.constant 0 : index
    %c3 = arith.constant 3 : index
    %c0_36 = arith.constant 0 : index
    %52 = vector.load %arg2[%c0_35, %c3, %c0_36] : memref<1x8x128xf32, #tpu.memory_space<vmem>>, vector<1x1x128xf32>
    %53 = vector.shape_cast %52 : vector<1x1x128xf32> to vector<1x128xf32>
    %54 = vector.broadcast %53 : vector<1x128xf32> to vector<128x128xf32>
    %55 = vector.broadcast %51 : vector<128x1xf32> to vector<128x128xf32>
    %56 = arith.subf %54, %55 : vector<128x128xf32>
    %cst_37 = arith.constant -5.000000e+01 : f32
    %57 = vector.broadcast %cst_37 : f32 to vector<128x128xf32>
    %58 = arith.mulf %57, %56 : vector<128x128xf32>
    %59 = arith.mulf %58, %56 : vector<128x128xf32>
    %60 = math.exp %59 : vector<128x128xf32>
    %c0_38 = arith.constant 0 : index
    %c0_39 = arith.constant 0 : index
    %c0_40 = arith.constant 0 : index
    %61 = vector.load %arg4[%c0_38, %c0_39, %c0_40] : memref<1x128x128xf32, #tpu.memory_space<vmem>>, vector<1x128x128xf32>
    %62 = vector.shape_cast %61 : vector<1x128x128xf32> to vector<128x128xf32>
    %63 = arith.addf %62, %60 : vector<128x128xf32>
    %c0_41 = arith.constant 0 : index
    %c0_42 = arith.constant 0 : index
    %c0_43 = arith.constant 0 : index
    %64 = vector.load %arg4[%c0_41, %c0_42, %c0_43] : memref<1x128x128xf32, #tpu.memory_space<vmem>>, vector<1x128x128xf32>
    %65 = vector.shape_cast %64 : vector<1x128x128xf32> to vector<128x128xf32>
    %66 = vector.shape_cast %63 : vector<128x128xf32> to vector<1x128x128xf32>
    tpu.vector_store %arg4[%c0_41, %c0_42, %c0_43], %66 {strides = array<i32>} : memref<1x128x128xf32, #tpu.memory_space<vmem>>, vector<1x128x128xf32>,
    %c0_44 = arith.constant 0 : index
    %c0_45 = arith.constant 0 : index
    %67 = vector.load %arg3[%c0_44, %c0_45] : memref<128x1xf32, #tpu.memory_space<vmem>>, vector<128x1xf32>
    %c0_46 = arith.constant 0 : index
    %c4 = arith.constant 4 : index
    %c0_47 = arith.constant 0 : index
    %68 = vector.load %arg2[%c0_46, %c4, %c0_47] : memref<1x8x128xf32, #tpu.memory_space<vmem>>, vector<1x1x128xf32>
    %69 = vector.shape_cast %68 : vector<1x1x128xf32> to vector<1x128xf32>
    %70 = vector.broadcast %69 : vector<1x128xf32> to vector<128x128xf32>
    %71 = vector.broadcast %67 : vector<128x1xf32> to vector<128x128xf32>
    %72 = arith.subf %70, %71 : vector<128x128xf32>
    %cst_48 = arith.constant -5.000000e+01 : f32
    %73 = vector.broadcast %cst_48 : f32 to vector<128x128xf32>
    %74 = arith.mulf %73, %72 : vector<128x128xf32>
    %75 = arith.mulf %74, %72 : vector<128x128xf32>
    %76 = math.exp %75 : vector<128x128xf32>
    %c0_49 = arith.constant 0 : index
    %c0_50 = arith.constant 0 : index
    %c0_51 = arith.constant 0 : index
    %77 = vector.load %arg4[%c0_49, %c0_50, %c0_51] : memref<1x128x128xf32, #tpu.memory_space<vmem>>, vector<1x128x128xf32>
    %78 = vector.shape_cast %77 : vector<1x128x128xf32> to vector<128x128xf32>
    %79 = arith.addf %78, %76 : vector<128x128xf32>
    %c0_52 = arith.constant 0 : index
    %c0_53 = arith.constant 0 : index
    %c0_54 = arith.constant 0 : index
    %80 = vector.load %arg4[%c0_52, %c0_53, %c0_54] : memref<1x128x128xf32, #tpu.memory_space<vmem>>, vector<1x128x128xf32>
    %81 = vector.shape_cast %80 : vector<1x128x128xf32> to vector<128x128xf32>
    %82 = vector.shape_cast %79 : vector<128x128xf32> to vector<1x128x128xf32>
    tpu.vector_store %arg4[%c0_52, %c0_53, %c0_54], %82 {strides = array<i32>} : memref<1x128x128xf32, #tpu.memory_space<vmem>>, vector<1x128x128xf32>,
    %c0_55 = arith.constant 0 : index
    %c0_56 = arith.constant 0 : index
    %83 = vector.load %arg3[%c0_55, %c0_56] : memref<128x1xf32, #tpu.memory_space<vmem>>, vector<128x1xf32>
    %c0_57 = arith.constant 0 : index
    %c5 = arith.constant 5 : index
    %c0_58 = arith.constant 0 : index
    %84 = vector.load %arg2[%c0_57, %c5, %c0_58] : memref<1x8x128xf32, #tpu.memory_space<vmem>>, vector<1x1x128xf32>
    %85 = vector.shape_cast %84 : vector<1x1x128xf32> to vector<1x128xf32>
    %86 = vector.broadcast %85 : vector<1x128xf32> to vector<128x128xf32>
    %87 = vector.broadcast %83 : vector<128x1xf32> to vector<128x128xf32>
    %88 = arith.subf %86, %87 : vector<128x128xf32>
    %cst_59 = arith.constant -5.000000e+01 : f32
    %89 = vector.broadcast %cst_59 : f32 to vector<128x128xf32>
    %90 = arith.mulf %89, %88 : vector<128x128xf32>
    %91 = arith.mulf %90, %88 : vector<128x128xf32>
    %92 = math.exp %91 : vector<128x128xf32>
    %c0_60 = arith.constant 0 : index
    %c0_61 = arith.constant 0 : index
    %c0_62 = arith.constant 0 : index
    %93 = vector.load %arg4[%c0_60, %c0_61, %c0_62] : memref<1x128x128xf32, #tpu.memory_space<vmem>>, vector<1x128x128xf32>
    %94 = vector.shape_cast %93 : vector<1x128x128xf32> to vector<128x128xf32>
    %95 = arith.addf %94, %92 : vector<128x128xf32>
    %c0_63 = arith.constant 0 : index
    %c0_64 = arith.constant 0 : index
    %c0_65 = arith.constant 0 : index
    %96 = vector.load %arg4[%c0_63, %c0_64, %c0_65] : memref<1x128x128xf32, #tpu.memory_space<vmem>>, vector<1x128x128xf32>
    %97 = vector.shape_cast %96 : vector<1x128x128xf32> to vector<128x128xf32>
    %98 = vector.shape_cast %95 : vector<128x128xf32> to vector<1x128x128xf32>
    tpu.vector_store %arg4[%c0_63, %c0_64, %c0_65], %98 {strides = array<i32>} : memref<1x128x128xf32, #tpu.memory_space<vmem>>, vector<1x128x128xf32>,
    %c0_66 = arith.constant 0 : index
    %c0_67 = arith.constant 0 : index
    %99 = vector.load %arg3[%c0_66, %c0_67] : memref<128x1xf32, #tpu.memory_space<vmem>>, vector<128x1xf32>
    %c0_68 = arith.constant 0 : index
    %c6 = arith.constant 6 : index
    %c0_69 = arith.constant 0 : index
    %100 = vector.load %arg2[%c0_68, %c6, %c0_69] : memref<1x8x128xf32, #tpu.memory_space<vmem>>, vector<1x1x128xf32>
    %101 = vector.shape_cast %100 : vector<1x1x128xf32> to vector<1x128xf32>
    %102 = vector.broadcast %101 : vector<1x128xf32> to vector<128x128xf32>
    %103 = vector.broadcast %99 : vector<128x1xf32> to vector<128x128xf32>
    %104 = arith.subf %102, %103 : vector<128x128xf32>
    %cst_70 = arith.constant -5.000000e+01 : f32
    %105 = vector.broadcast %cst_70 : f32 to vector<128x128xf32>
    %106 = arith.mulf %105, %104 : vector<128x128xf32>
    %107 = arith.mulf %106, %104 : vector<128x128xf32>
    %108 = math.exp %107 : vector<128x128xf32>
    %c0_71 = arith.constant 0 : index
    %c0_72 = arith.constant 0 : index
    %c0_73 = arith.constant 0 : index
    %109 = vector.load %arg4[%c0_71, %c0_72, %c0_73] : memref<1x128x128xf32, #tpu.memory_space<vmem>>, vector<1x128x128xf32>
    %110 = vector.shape_cast %109 : vector<1x128x128xf32> to vector<128x128xf32>
    %111 = arith.addf %110, %108 : vector<128x128xf32>
    %c0_74 = arith.constant 0 : index
    %c0_75 = arith.constant 0 : index
    %c0_76 = arith.constant 0 : index
    %112 = vector.load %arg4[%c0_74, %c0_75, %c0_76] : memref<1x128x128xf32, #tpu.memory_space<vmem>>, vector<1x128x128xf32>
    %113 = vector.shape_cast %112 : vector<1x128x128xf32> to vector<128x128xf32>
    %114 = vector.shape_cast %111 : vector<128x128xf32> to vector<1x128x128xf32>
    tpu.vector_store %arg4[%c0_74, %c0_75, %c0_76], %114 {strides = array<i32>} : memref<1x128x128xf32, #tpu.memory_space<vmem>>, vector<1x128x128xf32>,
    %c0_77 = arith.constant 0 : index
    %c0_78 = arith.constant 0 : index
    %115 = vector.load %arg3[%c0_77, %c0_78] : memref<128x1xf32, #tpu.memory_space<vmem>>, vector<128x1xf32>
    %c0_79 = arith.constant 0 : index
    %c7 = arith.constant 7 : index
    %c0_80 = arith.constant 0 : index
    %116 = vector.load %arg2[%c0_79, %c7, %c0_80] : memref<1x8x128xf32, #tpu.memory_space<vmem>>, vector<1x1x128xf32>
    %117 = vector.shape_cast %116 : vector<1x1x128xf32> to vector<1x128xf32>
    %118 = vector.broadcast %117 : vector<1x128xf32> to vector<128x128xf32>
    %119 = vector.broadcast %115 : vector<128x1xf32> to vector<128x128xf32>
    %120 = arith.subf %118, %119 : vector<128x128xf32>
    %cst_81 = arith.constant -5.000000e+01 : f32
    %121 = vector.broadcast %cst_81 : f32 to vector<128x128xf32>
    %122 = arith.mulf %121, %120 : vector<128x128xf32>
    %123 = arith.mulf %122, %120 : vector<128x128xf32>
    %124 = math.exp %123 : vector<128x128xf32>
    %c0_82 = arith.constant 0 : index
    %c0_83 = arith.constant 0 : index
    %c0_84 = arith.constant 0 : index
    %125 = vector.load %arg4[%c0_82, %c0_83, %c0_84] : memref<1x128x128xf32, #tpu.memory_space<vmem>>, vector<1x128x128xf32>
    %126 = vector.shape_cast %125 : vector<1x128x128xf32> to vector<128x128xf32>
    %127 = arith.addf %126, %124 : vector<128x128xf32>
    %c0_85 = arith.constant 0 : index
    %c0_86 = arith.constant 0 : index
    %c0_87 = arith.constant 0 : index
    %128 = vector.load %arg4[%c0_85, %c0_86, %c0_87] : memref<1x128x128xf32, #tpu.memory_space<vmem>>, vector<1x128x128xf32>
    %129 = vector.shape_cast %128 : vector<1x128x128xf32> to vector<128x128xf32>
    %130 = vector.shape_cast %127 : vector<128x128xf32> to vector<1x128x128xf32>
    tpu.vector_store %arg4[%c0_85, %c0_86, %c0_87], %130 {strides = array<i32>} : memref<1x128x128xf32, #tpu.memory_space<vmem>>, vector<1x128x128xf32>,
    return
  }
  func.func @transform_0(%arg0: i32, %arg1: i32) -> (i32, i32, i32) {
    %c0_i32 = arith.constant 0 : i32
    %c0_i32_0 = arith.constant 0 : i32
    return %arg0, %arg1, %c0_i32 : i32, i32, i32
  }
  func.func @transform_1(%arg0: i32, %arg1: i32) -> (i32, i32) {
    %c0_i32 = arith.constant 0 : i32
    %c0_i32_0 = arith.constant 0 : i32
    %c0_i32_1 = arith.constant 0 : i32
    return %c0_i32, %c0_i32_0 : i32, i32
  }
  func.func @transform_2(%arg0: i32, %arg1: i32) -> (i32, i32, i32) {
    %c0_i32 = arith.constant 0 : i32
    %c0_i32_0 = arith.constant 0 : i32
    %c0_i32_1 = arith.constant 0 : i32
    return %arg0, %c0_i32, %c0_i32_0 : i32, i32, i32
  }
}

</mosaic_0001>

<llo_original>
// kernel: tpu_custom_call.1
$region0: #{tpu_custom_call.1}
  #allocation0 [shape = 'u32[]', space=smem, size = 0x4, offset = 0x4, fixed_abs, tag = 'smem constant byte address 0x4 - core index']
  #allocation1 [shape = 'u32[144,128]{1,0:T(1,128)}', space=vmem, size = 0x12000, scoped, tag = 'internal scratch']
  %s0 = inlined_call_operand.vmem [shape: f32[1,16,128], index: 0, kind: input, shape index: {}]
  %s1 = inlined_call_operand.vmem [shape: f32[128,1], index: 1, kind: input, shape index: {}]
  %s2 = inlined_call_operand.hbm [shape: f32[1,128,128], index: 2, kind: output, shape index: {}]
  %s3 = sld [smem:[#allocation0]]
  $region45: #{tpu_custom_call.1} parent=0
    _
  %s5 = ssub.s32 1, %s3
  %s6 = scalar_select 0, %s5, %s3
  $region1: #{tpu_custom_call.1} parent=0
    #allocation2 [shape = 'u8[65536]{0}', space=vmem, size = 0x10000, scoped, tag = 'output window, operand 0, single buffered']
    #allocation3 [shape = 's32[2]{0}', space=sflag, size = 0x8, scoped, tag = 'scoped memory for tpu_custom_call.1']
    %7 = vsyncpa [#allocation3], 0
    loop: start=0, step=1, limit=4
    $region2: #{tpu_custom_call.1} parent=1 // loop_pre_header
      _
    $region3: #{tpu_custom_call.1} parent=1 // loop_header
      %s9 = sphi 0, %s13
      %p10 = scmp.ge.s32.totalorder %s9, 4
      %s16 = sphi 0, %s28
      %s17 = sphi 0, %s24
      %s18 = sphi 0, %s16
      %s19 = sphi 0, %s17
      %s20 = sphi 0, %s18
      %s21 = sphi 0, %s19
      %s33 = sphi 0, %s35
      %s36 = sphi 0, %s33
      %s37 = sphi 0, %s36
      %s53 = sphi 0, %s37
      %s57 = sphi 0, %s57
      %s59 = sphi 0, %s57
      %s60 = sphi 0, %s59
      %s74 = sphi 0, %s60
      %s80 = sphi 0, %s82
      %s83 = sphi 0, %s80
      %s84 = sphi 0, %s83
      %s100 = sphi 0, %s84
    $region4: #{tpu_custom_call.1} parent=1 // loop_header_branch
      %12 = sbr.rel (%p10) target = $region8
    $region5: #{tpu_custom_call.1} parent=1 // loop_body
      %s14 = ssub.s32 %s9, 1
      %s15 = ssub.s32 %s9, 2
      %s22 = sadd.s32 1, %s17
      %p23 = scmp.ge.s32.totalorder %s22, 2
      %s24 = scalar_select %p23, 0, %s22
      %s25 = sadd.s32 1, %s16
      %s26 = scalar_select %p23, %s25, %s16
      %p27 = scmp.ge.s32.totalorder %s26, 1
      %s28 = scalar_select %p27, 0, %s26
      %s29 = ssub.s32 %s16, %s28
      %s30 = ssub.s32 %s17, %s24
      %s31 = sor.u32 %s29, %s30
      %p32 = scmp.eq.s32.totalorder %s31, 0
      %s34 = sadd.s32 %s33, 1
      %s35 = scalar_select %p32, %s33, %s34
      %p38 = pneg %p32
      %p39 = scmp.eq.s32.totalorder %s9, 1
      %p40 = por %p38, %p39
      %p41 = scmp.ne.s32.totalorder %s33, %s36
      %p42 = scmp.eq.s32.totalorder %s9, 0
      %p43 = por %p41, %p42
      %p44 = scmp.ne.s32.totalorder %s33, %s36
      %p45 = scmp.eq.s32.totalorder %s14, 1
      %p46 = por %p44, %p45
      %p47 = scmp.ne.s32.totalorder %s36, %s37
      %p48 = scmp.eq.s32.totalorder %s14, 0
      %p49 = por %p47, %p48
      %p50 = scmp.ne.s32.totalorder %s36, %s37
      %p51 = scmp.eq.s32.totalorder %s15, 1
      %p52 = por %p50, %p51
      %p54 = scmp.ne.s32.totalorder %s37, %s53
      %p55 = scmp.eq.s32.totalorder %s15, 0
      %p56 = por %p54, %p55
      %s58 = sadd.s32 %s57, 1
      %p61 = scmp.eq.s32.totalorder %s9, 1
      %p62 = scmp.ne.s32.totalorder %s57, %s59
      %p63 = scmp.eq.s32.totalorder %s9, 0
      %p64 = por %p62, %p63
      %p65 = scmp.ne.s32.totalorder %s57, %s59
      %p66 = scmp.eq.s32.totalorder %s14, 1
      %p67 = por %p65, %p66
      %p68 = scmp.ne.s32.totalorder %s59, %s60
      %p69 = scmp.eq.s32.totalorder %s14, 0
      %p70 = por %p68, %p69
      %p71 = scmp.ne.s32.totalorder %s59, %s60
      %p72 = scmp.eq.s32.totalorder %s15, 1
      %p73 = por %p71, %p72
      %p75 = scmp.ne.s32.totalorder %s60, %s74
      %p76 = scmp.eq.s32.totalorder %s15, 0
      %p77 = por %p75, %p76
      %s78 = ssub.s32 %s16, %s28
      %p79 = scmp.eq.s32.totalorder %s78, 0
      %s81 = sadd.s32 %s80, 1
      %s82 = scalar_select %p79, %s80, %s81
      %p85 = pneg %p79
      %p86 = scmp.eq.s32.totalorder %s9, 1
      %p87 = por %p85, %p86
      %p88 = scmp.ne.s32.totalorder %s80, %s83
      %p89 = scmp.eq.s32.totalorder %s9, 0
      %p90 = por %p88, %p89
      %p91 = scmp.ne.s32.totalorder %s80, %s83
      %p92 = scmp.eq.s32.totalorder %s14, 1
      %p93 = por %p91, %p92
      %p94 = scmp.ne.s32.totalorder %s83, %s84
      %p95 = scmp.eq.s32.totalorder %s14, 0
      %p96 = por %p94, %p95
      %p97 = scmp.ne.s32.totalorder %s83, %s84
      %p98 = scmp.eq.s32.totalorder %s15, 1
      %p99 = por %p97, %p98
      %p101 = scmp.ne.s32.totalorder %s84, %s100
      %p102 = scmp.eq.s32.totalorder %s15, 0
      %p103 = por %p101, %p102
      %p104 = scmp.le.s32.totalorder 1, %s9
      %p105 = scmp.lt.s32.totalorder %s9, 3
      %p106 = pnand %p104, %p105
      %p107 = pneg %p106
      // Predicated region
      $region9: #{tpu_custom_call.1} parent=5 // pred_check
        _
      $region10: #{tpu_custom_call.1} parent=5 // pred_check_branch
        %109 = sbr.rel (%p106) target = $region12
      $region11: #{tpu_custom_call.1} parent=5 // pred_region
        %s110 = ssub.s32 %s9, 1
        // Predicated region
        $region13: #{tpu_custom_call.1} parent=11 // pred_check
          %p111 = pneg %p70
        $region14: #{tpu_custom_call.1} parent=11 // pred_check_branch
          %113 = sbr.rel (%p111) target = $region16
        $region15: #{tpu_custom_call.1} parent=11 // pred_region
          _
        $region16: #{tpu_custom_call.1} parent=11 // pred_fallthru
          _
      $region12: #{tpu_custom_call.1} parent=5 // pred_fallthru
        _
      %p114 = scmp.lt.s32.totalorder %s9, 2
      // Predicated region
      $region17: #{tpu_custom_call.1} parent=5 // pred_check
        %p115 = pneg %p114
      $region18: #{tpu_custom_call.1} parent=5 // pred_check_branch
        %117 = sbr.rel (%p115) target = $region20
      $region19: #{tpu_custom_call.1} parent=5 // pred_region
        // Predicated region
        $region21: #{tpu_custom_call.1} parent=19 // pred_check
          %p118 = pneg %p43
        $region22: #{tpu_custom_call.1} parent=19 // pred_check_branch
          %120 = sbr.rel (%p118) target = $region24
        $region23: #{tpu_custom_call.1} parent=19 // pred_region
          %p121 = scmp.lt.s32.totalorder %s16, 0
          %s122 = scalar_select %p121, %s16, 0
          %p123 = scmp.lt.s32.totalorder %s17, 1
          %s124 = scalar_select %p123, %s17, 1
          %s125 = smul.addr %s122, 2
          %s126 = sadd.s32 %s124, %s125
          %s127 = smul.addr %s126, 8
          %s128 = scalar_lea.vmem %s0, %s127
        $region24: #{tpu_custom_call.1} parent=19 // pred_fallthru
          _
      $region20: #{tpu_custom_call.1} parent=5 // pred_fallthru
        _
      %p129 = scmp.le.s32.totalorder 1, %s9
      %p130 = scmp.lt.s32.totalorder %s9, 3
      %p131 = pnand %p129, %p130
      %p132 = pneg %p131
      // Predicated region
      $region25: #{tpu_custom_call.1} parent=5 // pred_check
        _
      $region26: #{tpu_custom_call.1} parent=5 // pred_check_branch
        %134 = sbr.rel (%p131) target = $region28
      $region27: #{tpu_custom_call.1} parent=5 // pred_region
        %s135 = ssub.s32 %s9, 1
        %p136 = scmp.lt.s32.totalorder %s18, 0
        %s137 = scalar_select %p136, %s18, 0
        %p138 = scmp.lt.s32.totalorder %s19, 1
        %s139 = scalar_select %p138, %s19, 1
        %s140 = smul.addr %s137, 2
        %s141 = sadd.s32 %s139, %s140
        %s142 = smul.addr %s141, 8
        %s143 = scalar_lea.vmem %s0, %s142
        %p144 = pneg %p49
        %p145 = pneg %p46
        %p146 = pneg %p70
        %p147 = pneg %p67
        %p148 = pneg %p96
        %p149 = pneg %p93
        %p150 = scmp.lt.s32.totalorder %s18, 0
        %s151 = scalar_select %p150, %s18, 0
        %p152 = scmp.lt.s32.totalorder %s19, 1
        %s153 = scalar_select %p152, %s19, 1
        %s154 = smul.addr %s151, 2
        %s155 = sadd.s32 %s153, %s154
        %s156 = smul.addr %s155, 8
        %s157 = scalar_lea.vmem %s0, %s156
        %p158 = scmp.eq.s32.totalorder %s19, 0
        // Predicated region
        $region29: #{tpu_custom_call.1} parent=27 // pred_check
          %p159 = pneg %p158
        $region30: #{tpu_custom_call.1} parent=27 // pred_check_branch
          %161 = sbr.rel (%p159) target = $region32
        $region31: #{tpu_custom_call.1} parent=27 // pred_region
          %162 = vst [vmem:[#allocation2] sm:$0xff] 0.0
          %163 = vst [vmem:[#allocation2 + $0x8] sm:$0xff] 0.0
          %164 = vst [vmem:[#allocation2 + $0x10] sm:$0xff] 0.0
          %165 = vst [vmem:[#allocation2 + $0x18] sm:$0xff] 0.0
          %166 = vst [vmem:[#allocation2 + $0x20] sm:$0xff] 0.0
          %167 = vst [vmem:[#allocation2 + $0x28] sm:$0xff] 0.0
          %168 = vst [vmem:[#allocation2 + $0x30] sm:$0xff] 0.0
          %169 = vst [vmem:[#allocation2 + $0x38] sm:$0xff] 0.0
          %170 = vst [vmem:[#allocation2 + $0x40] sm:$0xff] 0.0
          %171 = vst [vmem:[#allocation2 + $0x48] sm:$0xff] 0.0
          %172 = vst [vmem:[#allocation2 + $0x50] sm:$0xff] 0.0
          %173 = vst [vmem:[#allocation2 + $0x58] sm:$0xff] 0.0
          %174 = vst [vmem:[#allocation2 + $0x60] sm:$0xff] 0.0
          %175 = vst [vmem:[#allocation2 + $0x68] sm:$0xff] 0.0
          %176 = vst [vmem:[#allocation2 + $0x70] sm:$0xff] 0.0
          %177 = vst [vmem:[#allocation2 + $0x78] sm:$0xff] 0.0
        $region32: #{tpu_custom_call.1} parent=27 // pred_fallthru
          _
        %v178 = vld [vmem:[%s1] sm:$0xff]
        %v179 = vld [vmem:[%s1 + $0x8] sm:$0xff]
        %v180 = vld [vmem:[%s1 + $0x10] sm:$0xff]
        %v181 = vld [vmem:[%s1 + $0x18] sm:$0xff]
        %v182 = vld [vmem:[%s1 + $0x20] sm:$0xff]
        %v183 = vld [vmem:[%s1 + $0x28] sm:$0xff]
        %v184 = vld [vmem:[%s1 + $0x30] sm:$0xff]
        %v185 = vld [vmem:[%s1 + $0x38] sm:$0xff]
        %v186 = vld [vmem:[%s1 + $0x40] sm:$0xff]
        %v187 = vld [vmem:[%s1 + $0x48] sm:$0xff]
        %v188 = vld [vmem:[%s1 + $0x50] sm:$0xff]
        %v189 = vld [vmem:[%s1 + $0x58] sm:$0xff]
        %v190 = vld [vmem:[%s1 + $0x60] sm:$0xff]
        %v191 = vld [vmem:[%s1 + $0x68] sm:$0xff]
        %v192 = vld [vmem:[%s1 + $0x70] sm:$0xff]
        %v193 = vld [vmem:[%s1 + $0x78] sm:$0xff]
        %v194 = vld [vmem:[%s157] sm:$0x1]
        %v195 = vlaneseq
        %v196 = vshrl.u32 %v195, 7
        %v197 = vsub.s32 0, %v196
        %v198 = vrot.slane %v194, %v197
        %200 = vset.pattern.permute.xlu0 0
        %201 = vperm.xlu0 %200, %v178
        %v202 = vpop.permute.xlu0 %201
        %205 = vset.pattern.permute.xlu0 0
        %206 = vperm.xlu0 %205, %v179
        %v207 = vpop.permute.xlu0 %206
        %210 = vset.pattern.permute.xlu0 0
        %211 = vperm.xlu0 %210, %v180
        %v212 = vpop.permute.xlu0 %211
        %215 = vset.pattern.permute.xlu0 0
        %216 = vperm.xlu0 %215, %v181
        %v217 = vpop.permute.xlu0 %216
        %220 = vset.pattern.permute.xlu0 0
        %221 = vperm.xlu0 %220, %v182
        %v222 = vpop.permute.xlu0 %221
        %225 = vset.pattern.permute.xlu0 0
        %226 = vperm.xlu0 %225, %v183
        %v227 = vpop.permute.xlu0 %226
        %230 = vset.pattern.permute.xlu0 0
        %231 = vperm.xlu0 %230, %v184
        %v232 = vpop.permute.xlu0 %231
        %235 = vset.pattern.permute.xlu0 0
        %236 = vperm.xlu0 %235, %v185
        %v237 = vpop.permute.xlu0 %236
        %240 = vset.pattern.permute.xlu0 0
        %241 = vperm.xlu0 %240, %v186
        %v242 = vpop.permute.xlu0 %241
        %245 = vset.pattern.permute.xlu0 0
        %246 = vperm.xlu0 %245, %v187
        %v247 = vpop.permute.xlu0 %246
        %250 = vset.pattern.permute.xlu0 0
        %251 = vperm.xlu0 %250, %v188
        %v252 = vpop.permute.xlu0 %251
        %255 = vset.pattern.permute.xlu0 0
        %256 = vperm.xlu0 %255, %v189
        %v257 = vpop.permute.xlu0 %256
        %260 = vset.pattern.permute.xlu0 0
        %261 = vperm.xlu0 %260, %v190
        %v262 = vpop.permute.xlu0 %261
        %265 = vset.pattern.permute.xlu0 0
        %266 = vperm.xlu0 %265, %v191
        %v267 = vpop.permute.xlu0 %266
        %270 = vset.pattern.permute.xlu0 0
        %271 = vperm.xlu0 %270, %v192
        %v272 = vpop.permute.xlu0 %271
        %275 = vset.pattern.permute.xlu0 0
        %276 = vperm.xlu0 %275, %v193
        %v277 = vpop.permute.xlu0 %276
        %v279 = vsub.f32 %v198, %v202
        %v280 = vsub.f32 %v198, %v207
        %v281 = vsub.f32 %v198, %v212
        %v282 = vsub.f32 %v198, %v217
        %v283 = vsub.f32 %v198, %v222
        %v284 = vsub.f32 %v198, %v227
        %v285 = vsub.f32 %v198, %v232
        %v286 = vsub.f32 %v198, %v237
        %v287 = vsub.f32 %v198, %v242
        %v288 = vsub.f32 %v198, %v247
        %v289 = vsub.f32 %v198, %v252
        %v290 = vsub.f32 %v198, %v257
        %v291 = vsub.f32 %v198, %v262
        %v292 = vsub.f32 %v198, %v267
        %v293 = vsub.f32 %v198, %v272
        %v294 = vsub.f32 %v198, %v277
        %v295 = vmul.f32 %v279, -50.0
        %v296 = vmul.f32 %v280, -50.0
        %v297 = vmul.f32 %v281, -50.0
        %v298 = vmul.f32 %v282, -50.0
        %v299 = vmul.f32 %v283, -50.0
        %v300 = vmul.f32 %v284, -50.0
        %v301 = vmul.f32 %v285, -50.0
        %v302 = vmul.f32 %v286, -50.0
        %v303 = vmul.f32 %v287, -50.0
        %v304 = vmul.f32 %v288, -50.0
        %v305 = vmul.f32 %v289, -50.0
        %v306 = vmul.f32 %v290, -50.0
        %v307 = vmul.f32 %v291, -50.0
        %v308 = vmul.f32 %v292, -50.0
        %v309 = vmul.f32 %v293, -50.0
        %v310 = vmul.f32 %v294, -50.0
        %v311 = vmul.f32 %v295, %v279
        %v312 = vmul.f32 %v296, %v280
        %v313 = vmul.f32 %v297, %v281
        %v314 = vmul.f32 %v298, %v282
        %v315 = vmul.f32 %v299, %v283
        %v316 = vmul.f32 %v300, %v284
        %v317 = vmul.f32 %v301, %v285
        %v318 = vmul.f32 %v302, %v286
        %v319 = vmul.f32 %v303, %v287
        %v320 = vmul.f32 %v304, %v288
        %v321 = vmul.f32 %v305, %v289
        %v322 = vmul.f32 %v306, %v290
        %v323 = vmul.f32 %v307, %v291
        %v324 = vmul.f32 %v308, %v292
        %v325 = vmul.f32 %v309, %v293
        %v326 = vmul.f32 %v310, %v294
        %v327 = vmul.f32 %v311, 1.442695
        %v328 = vpow.pop %v327
        %v329 = vmul.f32 %v312, 1.442695
        %v330 = vpow.pop %v329
        %v331 = vmul.f32 %v313, 1.442695
        %v332 = vpow.pop %v331
        %v333 = vmul.f32 %v314, 1.442695
        %v334 = vpow.pop %v333
        %v335 = vmul.f32 %v315, 1.442695
        %v336 = vpow.pop %v335
        %v337 = vmul.f32 %v316, 1.442695
        %v338 = vpow.pop %v337
        %v339 = vmul.f32 %v317, 1.442695
        %v340 = vpow.pop %v339
        %v341 = vmul.f32 %v318, 1.442695
        %v342 = vpow.pop %v341
        %v343 = vmul.f32 %v319, 1.442695
        %v344 = vpow.pop %v343
        %v345 = vmul.f32 %v320, 1.442695
        %v346 = vpow.pop %v345
        %v347 = vmul.f32 %v321, 1.442695
        %v348 = vpow.pop %v347
        %v349 = vmul.f32 %v322, 1.442695
        %v350 = vpow.pop %v349
        %v351 = vmul.f32 %v323, 1.442695
        %v352 = vpow.pop %v351
        %v353 = vmul.f32 %v324, 1.442695
        %v354 = vpow.pop %v353
        %v355 = vmul.f32 %v325, 1.442695
        %v356 = vpow.pop %v355
        %v357 = vmul.f32 %v326, 1.442695
        %v358 = vpow.pop %v357
        %v359 = vld [vmem:[#allocation2] sm:$0xff]
        %v360 = vld [vmem:[#allocation2 + $0x8] sm:$0xff]
        %v361 = vld [vmem:[#allocation2 + $0x10] sm:$0xff]
        %v362 = vld [vmem:[#allocation2 + $0x18] sm:$0xff]
        %v363 = vld [vmem:[#allocation2 + $0x20] sm:$0xff]
        %v364 = vld [vmem:[#allocation2 + $0x28] sm:$0xff]
        %v365 = vld [vmem:[#allocation2 + $0x30] sm:$0xff]
        %v366 = vld [vmem:[#allocation2 + $0x38] sm:$0xff]
        %v367 = vld [vmem:[#allocation2 + $0x40] sm:$0xff]
        %v368 = vld [vmem:[#allocation2 + $0x48] sm:$0xff]
        %v369 = vld [vmem:[#allocation2 + $0x50] sm:$0xff]
        %v370 = vld [vmem:[#allocation2 + $0x58] sm:$0xff]
        %v371 = vld [vmem:[#allocation2 + $0x60] sm:$0xff]
        %v372 = vld [vmem:[#allocation2 + $0x68] sm:$0xff]
        %v373 = vld [vmem:[#allocation2 + $0x70] sm:$0xff]
        %v374 = vld [vmem:[#allocation2 + $0x78] sm:$0xff]
        %v375 = vadd.f32 %v359, %v328
        %v376 = vadd.f32 %v360, %v330
        %v377 = vadd.f32 %v361, %v332
        %v378 = vadd.f32 %v362, %v334
        %v379 = vadd.f32 %v363, %v336
        %v380 = vadd.f32 %v364, %v338
        %v381 = vadd.f32 %v365, %v340
        %v382 = vadd.f32 %v366, %v342
        %v383 = vadd.f32 %v367, %v344
        %v384 = vadd.f32 %v368, %v346
        %v385 = vadd.f32 %v369, %v348
        %v386 = vadd.f32 %v370, %v350
        %v387 = vadd.f32 %v371, %v352
        %v388 = vadd.f32 %v372, %v354
        %v389 = vadd.f32 %v373, %v356
        %v390 = vadd.f32 %v374, %v358
        %391 = vst [vmem:[#allocation2] sm:$0xff] %v375
        %392 = vst [vmem:[#allocation2 + $0x8] sm:$0xff] %v376
        %393 = vst [vmem:[#allocation2 + $0x10] sm:$0xff] %v377
        %394 = vst [vmem:[#allocation2 + $0x18] sm:$0xff] %v378
        %395 = vst [vmem:[#allocation2 + $0x20] sm:$0xff] %v379
        %396 = vst [vmem:[#allocation2 + $0x28] sm:$0xff] %v380
        %397 = vst [vmem:[#allocation2 + $0x30] sm:$0xff] %v381
        %398 = vst [vmem:[#allocation2 + $0x38] sm:$0xff] %v382
        %399 = vst [vmem:[#allocation2 + $0x40] sm:$0xff] %v383
        %400 = vst [vmem:[#allocation2 + $0x48] sm:$0xff] %v384
        %401 = vst [vmem:[#allocation2 + $0x50] sm:$0xff] %v385
        %402 = vst [vmem:[#allocation2 + $0x58] sm:$0xff] %v386
        %403 = vst [vmem:[#allocation2 + $0x60] sm:$0xff] %v387
        %404 = vst [vmem:[#allocation2 + $0x68] sm:$0xff] %v388
        %405 = vst [vmem:[#allocation2 + $0x70] sm:$0xff] %v389
        %406 = vst [vmem:[#allocation2 + $0x78] sm:$0xff] %v390
        %v407 = vld [vmem:[%s1] sm:$0xff]
        %v408 = vld [vmem:[%s1 + $0x8] sm:$0xff]
        %v409 = vld [vmem:[%s1 + $0x10] sm:$0xff]
        %v410 = vld [vmem:[%s1 + $0x18] sm:$0xff]
        %v411 = vld [vmem:[%s1 + $0x20] sm:$0xff]
        %v412 = vld [vmem:[%s1 + $0x28] sm:$0xff]
        %v413 = vld [vmem:[%s1 + $0x30] sm:$0xff]
        %v414 = vld [vmem:[%s1 + $0x38] sm:$0xff]
        %v415 = vld [vmem:[%s1 + $0x40] sm:$0xff]
        %v416 = vld [vmem:[%s1 + $0x48] sm:$0xff]
        %v417 = vld [vmem:[%s1 + $0x50] sm:$0xff]
        %v418 = vld [vmem:[%s1 + $0x58] sm:$0xff]
        %v419 = vld [vmem:[%s1 + $0x60] sm:$0xff]
        %v420 = vld [vmem:[%s1 + $0x68] sm:$0xff]
        %v421 = vld [vmem:[%s1 + $0x70] sm:$0xff]
        %v422 = vld [vmem:[%s1 + $0x78] sm:$0xff]
        %v423 = vld [vmem:[%s157 + $0x1] sm:$0x1]
        %v424 = vlaneseq
        %v425 = vshrl.u32 %v424, 7
        %v426 = vsub.s32 0, %v425
        %v427 = vrot.slane %v423, %v426
        %429 = vset.pattern.permute.xlu0 0
        %430 = vperm.xlu0 %429, %v407
        %v431 = vpop.permute.xlu0 %430
        %434 = vset.pattern.permute.xlu0 0
        %435 = vperm.xlu0 %434, %v408
        %v436 = vpop.permute.xlu0 %435
        %439 = vset.pattern.permute.xlu0 0
        %440 = vperm.xlu0 %439, %v409
        %v441 = vpop.permute.xlu0 %440
        %444 = vset.pattern.permute.xlu0 0
        %445 = vperm.xlu0 %444, %v410
        %v446 = vpop.permute.xlu0 %445
        %449 = vset.pattern.permute.xlu0 0
        %450 = vperm.xlu0 %449, %v411
        %v451 = vpop.permute.xlu0 %450
        %454 = vset.pattern.permute.xlu0 0
        %455 = vperm.xlu0 %454, %v412
        %v456 = vpop.permute.xlu0 %455
        %459 = vset.pattern.permute.xlu0 0
        %460 = vperm.xlu0 %459, %v413
        %v461 = vpop.permute.xlu0 %460
        %464 = vset.pattern.permute.xlu0 0
        %465 = vperm.xlu0 %464, %v414
        %v466 = vpop.permute.xlu0 %465
        %469 = vset.pattern.permute.xlu0 0
        %470 = vperm.xlu0 %469, %v415
        %v471 = vpop.permute.xlu0 %470
        %474 = vset.pattern.permute.xlu0 0
        %475 = vperm.xlu0 %474, %v416
        %v476 = vpop.permute.xlu0 %475
        %479 = vset.pattern.permute.xlu0 0
        %480 = vperm.xlu0 %479, %v417
        %v481 = vpop.permute.xlu0 %480
        %484 = vset.pattern.permute.xlu0 0
        %485 = vperm.xlu0 %484, %v418
        %v486 = vpop.permute.xlu0 %485
        %489 = vset.pattern.permute.xlu0 0
        %490 = vperm.xlu0 %489, %v419
        %v491 = vpop.permute.xlu0 %490
        %494 = vset.pattern.permute.xlu0 0
        %495 = vperm.xlu0 %494, %v420
        %v496 = vpop.permute.xlu0 %495
        %499 = vset.pattern.permute.xlu0 0
        %500 = vperm.xlu0 %499, %v421
        %v501 = vpop.permute.xlu0 %500
        %504 = vset.pattern.permute.xlu0 0
        %505 = vperm.xlu0 %504, %v422
        %v506 = vpop.permute.xlu0 %505
        %v508 = vsub.f32 %v427, %v431
        %v509 = vsub.f32 %v427, %v436
        %v510 = vsub.f32 %v427, %v441
        %v511 = vsub.f32 %v427, %v446
        %v512 = vsub.f32 %v427, %v451
        %v513 = vsub.f32 %v427, %v456
        %v514 = vsub.f32 %v427, %v461
        %v515 = vsub.f32 %v427, %v466
        %v516 = vsub.f32 %v427, %v471
        %v517 = vsub.f32 %v427, %v476
        %v518 = vsub.f32 %v427, %v481
        %v519 = vsub.f32 %v427, %v486
        %v520 = vsub.f32 %v427, %v491
        %v521 = vsub.f32 %v427, %v496
        %v522 = vsub.f32 %v427, %v501
        %v523 = vsub.f32 %v427, %v506
        %v524 = vmul.f32 %v508, -50.0
        %v525 = vmul.f32 %v509, -50.0
        %v526 = vmul.f32 %v510, -50.0
        %v527 = vmul.f32 %v511, -50.0
        %v528 = vmul.f32 %v512, -50.0
        %v529 = vmul.f32 %v513, -50.0
        %v530 = vmul.f32 %v514, -50.0
        %v531 = vmul.f32 %v515, -50.0
        %v532 = vmul.f32 %v516, -50.0
        %v533 = vmul.f32 %v517, -50.0
        %v534 = vmul.f32 %v518, -50.0
        %v535 = vmul.f32 %v519, -50.0
        %v536 = vmul.f32 %v520, -50.0
        %v537 = vmul.f32 %v521, -50.0
        %v538 = vmul.f32 %v522, -50.0
        %v539 = vmul.f32 %v523, -50.0
        %v540 = vmul.f32 %v524, %v508
        %v541 = vmul.f32 %v525, %v509
        %v542 = vmul.f32 %v526, %v510
        %v543 = vmul.f32 %v527, %v511
        %v544 = vmul.f32 %v528, %v512
        %v545 = vmul.f32 %v529, %v513
        %v546 = vmul.f32 %v530, %v514
        %v547 = vmul.f32 %v531, %v515
        %v548 = vmul.f32 %v532, %v516
        %v549 = vmul.f32 %v533, %v517
        %v550 = vmul.f32 %v534, %v518
        %v551 = vmul.f32 %v535, %v519
        %v552 = vmul.f32 %v536, %v520
        %v553 = vmul.f32 %v537, %v521
        %v554 = vmul.f32 %v538, %v522
        %v555 = vmul.f32 %v539, %v523
        %v556 = vmul.f32 %v540, 1.442695
        %v557 = vpow.pop %v556
        %v558 = vmul.f32 %v541, 1.442695
        %v559 = vpow.pop %v558
        %v560 = vmul.f32 %v542, 1.442695
        %v561 = vpow.pop %v560
        %v562 = vmul.f32 %v543, 1.442695
        %v563 = vpow.pop %v562
        %v564 = vmul.f32 %v544, 1.442695
        %v565 = vpow.pop %v564
        %v566 = vmul.f32 %v545, 1.442695
        %v567 = vpow.pop %v566
        %v568 = vmul.f32 %v546, 1.442695
        %v569 = vpow.pop %v568
        %v570 = vmul.f32 %v547, 1.442695
        %v571 = vpow.pop %v570
        %v572 = vmul.f32 %v548, 1.442695
        %v573 = vpow.pop %v572
        %v574 = vmul.f32 %v549, 1.442695
        %v575 = vpow.pop %v574
        %v576 = vmul.f32 %v550, 1.442695
        %v577 = vpow.pop %v576
        %v578 = vmul.f32 %v551, 1.442695
        %v579 = vpow.pop %v578
        %v580 = vmul.f32 %v552, 1.442695
        %v581 = vpow.pop %v580
        %v582 = vmul.f32 %v553, 1.442695
        %v583 = vpow.pop %v582
        %v584 = vmul.f32 %v554, 1.442695
        %v585 = vpow.pop %v584
        %v586 = vmul.f32 %v555, 1.442695
        %v587 = vpow.pop %v586
        %v588 = vld [vmem:[#allocation2] sm:$0xff]
        %v589 = vld [vmem:[#allocation2 + $0x8] sm:$0xff]
        %v590 = vld [vmem:[#allocation2 + $0x10] sm:$0xff]
        %v591 = vld [vmem:[#allocation2 + $0x18] sm:$0xff]
        %v592 = vld [vmem:[#allocation2 + $0x20] sm:$0xff]
        %v593 = vld [vmem:[#allocation2 + $0x28] sm:$0xff]
        %v594 = vld [vmem:[#allocation2 + $0x30] sm:$0xff]
        %v595 = vld [vmem:[#allocation2 + $0x38] sm:$0xff]
        %v596 = vld [vmem:[#allocation2 + $0x40] sm:$0xff]
        %v597 = vld [vmem:[#allocation2 + $0x48] sm:$0xff]
        %v598 = vld [vmem:[#allocation2 + $0x50] sm:$0xff]
        %v599 = vld [vmem:[#allocation2 + $0x58] sm:$0xff]
        %v600 = vld [vmem:[#allocation2 + $0x60] sm:$0xff]
        %v601 = vld [vmem:[#allocation2 + $0x68] sm:$0xff]
        %v602 = vld [vmem:[#allocation2 + $0x70] sm:$0xff]
        %v603 = vld [vmem:[#allocation2 + $0x78] sm:$0xff]
        %v604 = vadd.f32 %v588, %v557
        %v605 = vadd.f32 %v589, %v559
        %v606 = vadd.f32 %v590, %v561
        %v607 = vadd.f32 %v591, %v563
        %v608 = vadd.f32 %v592, %v565
        %v609 = vadd.f32 %v593, %v567
        %v610 = vadd.f32 %v594, %v569
        %v611 = vadd.f32 %v595, %v571
        %v612 = vadd.f32 %v596, %v573
        %v613 = vadd.f32 %v597, %v575
        %v614 = vadd.f32 %v598, %v577
        %v615 = vadd.f32 %v599, %v579
        %v616 = vadd.f32 %v600, %v581
        %v617 = vadd.f32 %v601, %v583
        %v618 = vadd.f32 %v602, %v585
        %v619 = vadd.f32 %v603, %v587
        %620 = vst [vmem:[#allocation2] sm:$0xff] %v604
        %621 = vst [vmem:[#allocation2 + $0x8] sm:$0xff] %v605
        %622 = vst [vmem:[#allocation2 + $0x10] sm:$0xff] %v606
        %623 = vst [vmem:[#allocation2 + $0x18] sm:$0xff] %v607
        %624 = vst [vmem:[#allocation2 + $0x20] sm:$0xff] %v608
        %625 = vst [vmem:[#allocation2 + $0x28] sm:$0xff] %v609
        %626 = vst [vmem:[#allocation2 + $0x30] sm:$0xff] %v610
        %627 = vst [vmem:[#allocation2 + $0x38] sm:$0xff] %v611
        %628 = vst [vmem:[#allocation2 + $0x40] sm:$0xff] %v612
        %629 = vst [vmem:[#allocation2 + $0x48] sm:$0xff] %v613
        %630 = vst [vmem:[#allocation2 + $0x50] sm:$0xff] %v614
        %631 = vst [vmem:[#allocation2 + $0x58] sm:$0xff] %v615
        %632 = vst [vmem:[#allocation2 + $0x60] sm:$0xff] %v616
        %633 = vst [vmem:[#allocation2 + $0x68] sm:$0xff] %v617
        %634 = vst [vmem:[#allocation2 + $0x70] sm:$0xff] %v618
        %635 = vst [vmem:[#allocation2 + $0x78] sm:$0xff] %v619
        %v636 = vld [vmem:[%s1] sm:$0xff]
        %v637 = vld [vmem:[%s1 + $0x8] sm:$0xff]
        %v638 = vld [vmem:[%s1 + $0x10] sm:$0xff]
        %v639 = vld [vmem:[%s1 + $0x18] sm:$0xff]
        %v640 = vld [vmem:[%s1 + $0x20] sm:$0xff]
        %v641 = vld [vmem:[%s1 + $0x28] sm:$0xff]
        %v642 = vld [vmem:[%s1 + $0x30] sm:$0xff]
        %v643 = vld [vmem:[%s1 + $0x38] sm:$0xff]
        %v644 = vld [vmem:[%s1 + $0x40] sm:$0xff]
        %v645 = vld [vmem:[%s1 + $0x48] sm:$0xff]
        %v646 = vld [vmem:[%s1 + $0x50] sm:$0xff]
        %v647 = vld [vmem:[%s1 + $0x58] sm:$0xff]
        %v648 = vld [vmem:[%s1 + $0x60] sm:$0xff]
        %v649 = vld [vmem:[%s1 + $0x68] sm:$0xff]
        %v650 = vld [vmem:[%s1 + $0x70] sm:$0xff]
        %v651 = vld [vmem:[%s1 + $0x78] sm:$0xff]
        %v652 = vld [vmem:[%s157 + $0x2] sm:$0x1]
        %v653 = vlaneseq
        %v654 = vshrl.u32 %v653, 7
        %v655 = vsub.s32 0, %v654
        %v656 = vrot.slane %v652, %v655
        %658 = vset.pattern.permute.xlu0 0
        %659 = vperm.xlu0 %658, %v636
        %v660 = vpop.permute.xlu0 %659
        %663 = vset.pattern.permute.xlu0 0
        %664 = vperm.xlu0 %663, %v637
        %v665 = vpop.permute.xlu0 %664
        %668 = vset.pattern.permute.xlu0 0
        %669 = vperm.xlu0 %668, %v638
        %v670 = vpop.permute.xlu0 %669
        %673 = vset.pattern.permute.xlu0 0
        %674 = vperm.xlu0 %673, %v639
        %v675 = vpop.permute.xlu0 %674
        %678 = vset.pattern.permute.xlu0 0
        %679 = vperm.xlu0 %678, %v640
        %v680 = vpop.permute.xlu0 %679
        %683 = vset.pattern.permute.xlu0 0
        %684 = vperm.xlu0 %683, %v641
        %v685 = vpop.permute.xlu0 %684
        %688 = vset.pattern.permute.xlu0 0
        %689 = vperm.xlu0 %688, %v642
        %v690 = vpop.permute.xlu0 %689
        %693 = vset.pattern.permute.xlu0 0
        %694 = vperm.xlu0 %693, %v643
        %v695 = vpop.permute.xlu0 %694
        %698 = vset.pattern.permute.xlu0 0
        %699 = vperm.xlu0 %698, %v644
        %v700 = vpop.permute.xlu0 %699
        %703 = vset.pattern.permute.xlu0 0
        %704 = vperm.xlu0 %703, %v645
        %v705 = vpop.permute.xlu0 %704
        %708 = vset.pattern.permute.xlu0 0
        %709 = vperm.xlu0 %708, %v646
        %v710 = vpop.permute.xlu0 %709
        %713 = vset.pattern.permute.xlu0 0
        %714 = vperm.xlu0 %713, %v647
        %v715 = vpop.permute.xlu0 %714
        %718 = vset.pattern.permute.xlu0 0
        %719 = vperm.xlu0 %718, %v648
        %v720 = vpop.permute.xlu0 %719
        %723 = vset.pattern.permute.xlu0 0
        %724 = vperm.xlu0 %723, %v649
        %v725 = vpop.permute.xlu0 %724
        %728 = vset.pattern.permute.xlu0 0
        %729 = vperm.xlu0 %728, %v650
        %v730 = vpop.permute.xlu0 %729
        %733 = vset.pattern.permute.xlu0 0
        %734 = vperm.xlu0 %733, %v651
        %v735 = vpop.permute.xlu0 %734
        %v737 = vsub.f32 %v656, %v660
        %v738 = vsub.f32 %v656, %v665
        %v739 = vsub.f32 %v656, %v670
        %v740 = vsub.f32 %v656, %v675
        %v741 = vsub.f32 %v656, %v680
        %v742 = vsub.f32 %v656, %v685
        %v743 = vsub.f32 %v656, %v690
        %v744 = vsub.f32 %v656, %v695
        %v745 = vsub.f32 %v656, %v700
        %v746 = vsub.f32 %v656, %v705
        %v747 = vsub.f32 %v656, %v710
        %v748 = vsub.f32 %v656, %v715
        %v749 = vsub.f32 %v656, %v720
        %v750 = vsub.f32 %v656, %v725
        %v751 = vsub.f32 %v656, %v730
        %v752 = vsub.f32 %v656, %v735
        %v753 = vmul.f32 %v737, -50.0
        %v754 = vmul.f32 %v738, -50.0
        %v755 = vmul.f32 %v739, -50.0
        %v756 = vmul.f32 %v740, -50.0
        %v757 = vmul.f32 %v741, -50.0
        %v758 = vmul.f32 %v742, -50.0
        %v759 = vmul.f32 %v743, -50.0
        %v760 = vmul.f32 %v744, -50.0
        %v761 = vmul.f32 %v745, -50.0
        %v762 = vmul.f32 %v746, -50.0
        %v763 = vmul.f32 %v747, -50.0
        %v764 = vmul.f32 %v748, -50.0
        %v765 = vmul.f32 %v749, -50.0
        %v766 = vmul.f32 %v750, -50.0
        %v767 = vmul.f32 %v751, -50.0
        %v768 = vmul.f32 %v752, -50.0
        %v769 = vmul.f32 %v753, %v737
        %v770 = vmul.f32 %v754, %v738
        %v771 = vmul.f32 %v755, %v739
        %v772 = vmul.f32 %v756, %v740
        %v773 = vmul.f32 %v757, %v741
        %v774 = vmul.f32 %v758, %v742
        %v775 = vmul.f32 %v759, %v743
        %v776 = vmul.f32 %v760, %v744
        %v777 = vmul.f32 %v761, %v745
        %v778 = vmul.f32 %v762, %v746
        %v779 = vmul.f32 %v763, %v747
        %v780 = vmul.f32 %v764, %v748
        %v781 = vmul.f32 %v765, %v749
        %v782 = vmul.f32 %v766, %v750
        %v783 = vmul.f32 %v767, %v751
        %v784 = vmul.f32 %v768, %v752
        %v785 = vmul.f32 %v769, 1.442695
        %v786 = vpow.pop %v785
        %v787 = vmul.f32 %v770, 1.442695
        %v788 = vpow.pop %v787
        %v789 = vmul.f32 %v771, 1.442695
        %v790 = vpow.pop %v789
        %v791 = vmul.f32 %v772, 1.442695
        %v792 = vpow.pop %v791
        %v793 = vmul.f32 %v773, 1.442695
        %v794 = vpow.pop %v793
        %v795 = vmul.f32 %v774, 1.442695
        %v796 = vpow.pop %v795
        %v797 = vmul.f32 %v775, 1.442695
        %v798 = vpow.pop %v797
        %v799 = vmul.f32 %v776, 1.442695
        %v800 = vpow.pop %v799
        %v801 = vmul.f32 %v777, 1.442695
        %v802 = vpow.pop %v801
        %v803 = vmul.f32 %v778, 1.442695
        %v804 = vpow.pop %v803
        %v805 = vmul.f32 %v779, 1.442695
        %v806 = vpow.pop %v805
        %v807 = vmul.f32 %v780, 1.442695
        %v808 = vpow.pop %v807
        %v809 = vmul.f32 %v781, 1.442695
        %v810 = vpow.pop %v809
        %v811 = vmul.f32 %v782, 1.442695
        %v812 = vpow.pop %v811
        %v813 = vmul.f32 %v783, 1.442695
        %v814 = vpow.pop %v813
        %v815 = vmul.f32 %v784, 1.442695
        %v816 = vpow.pop %v815
        %v817 = vld [vmem:[#allocation2] sm:$0xff]
        %v818 = vld [vmem:[#allocation2 + $0x8] sm:$0xff]
        %v819 = vld [vmem:[#allocation2 + $0x10] sm:$0xff]
        %v820 = vld [vmem:[#allocation2 + $0x18] sm:$0xff]
        %v821 = vld [vmem:[#allocation2 + $0x20] sm:$0xff]
        %v822 = vld [vmem:[#allocation2 + $0x28] sm:$0xff]
        %v823 = vld [vmem:[#allocation2 + $0x30] sm:$0xff]
        %v824 = vld [vmem:[#allocation2 + $0x38] sm:$0xff]
        %v825 = vld [vmem:[#allocation2 + $0x40] sm:$0xff]
        %v826 = vld [vmem:[#allocation2 + $0x48] sm:$0xff]
        %v827 = vld [vmem:[#allocation2 + $0x50] sm:$0xff]
        %v828 = vld [vmem:[#allocation2 + $0x58] sm:$0xff]
        %v829 = vld [vmem:[#allocation2 + $0x60] sm:$0xff]
        %v830 = vld [vmem:[#allocation2 + $0x68] sm:$0xff]
        %v831 = vld [vmem:[#allocation2 + $0x70] sm:$0xff]
        %v832 = vld [vmem:[#allocation2 + $0x78] sm:$0xff]
        %v833 = vadd.f32 %v817, %v786
        %v834 = vadd.f32 %v818, %v788
        %v835 = vadd.f32 %v819, %v790
        %v836 = vadd.f32 %v820, %v792
        %v837 = vadd.f32 %v821, %v794
        %v838 = vadd.f32 %v822, %v796
        %v839 = vadd.f32 %v823, %v798
        %v840 = vadd.f32 %v824, %v800
        %v841 = vadd.f32 %v825, %v802
        %v842 = vadd.f32 %v826, %v804
        %v843 = vadd.f32 %v827, %v806
        %v844 = vadd.f32 %v828, %v808
        %v845 = vadd.f32 %v829, %v810
        %v846 = vadd.f32 %v830, %v812
        %v847 = vadd.f32 %v831, %v814
        %v848 = vadd.f32 %v832, %v816
        %849 = vst [vmem:[#allocation2] sm:$0xff] %v833
        %850 = vst [vmem:[#allocation2 + $0x8] sm:$0xff] %v834
        %851 = vst [vmem:[#allocation2 + $0x10] sm:$0xff] %v835
        %852 = vst [vmem:[#allocation2 + $0x18] sm:$0xff] %v836
        %853 = vst [vmem:[#allocation2 + $0x20] sm:$0xff] %v837
        %854 = vst [vmem:[#allocation2 + $0x28] sm:$0xff] %v838
        %855 = vst [vmem:[#allocation2 + $0x30] sm:$0xff] %v839
        %856 = vst [vmem:[#allocation2 + $0x38] sm:$0xff] %v840
        %857 = vst [vmem:[#allocation2 + $0x40] sm:$0xff] %v841
        %858 = vst [vmem:[#allocation2 + $0x48] sm:$0xff] %v842
        %859 = vst [vmem:[#allocation2 + $0x50] sm:$0xff] %v843
        %860 = vst [vmem:[#allocation2 + $0x58] sm:$0xff] %v844
        %861 = vst [vmem:[#allocation2 + $0x60] sm:$0xff] %v845
        %862 = vst [vmem:[#allocation2 + $0x68] sm:$0xff] %v846
        %863 = vst [vmem:[#allocation2 + $0x70] sm:$0xff] %v847
        %864 = vst [vmem:[#allocation2 + $0x78] sm:$0xff] %v848
        %v865 = vld [vmem:[%s1] sm:$0xff]
        %v866 = vld [vmem:[%s1 + $0x8] sm:$0xff]
        %v867 = vld [vmem:[%s1 + $0x10] sm:$0xff]
        %v868 = vld [vmem:[%s1 + $0x18] sm:$0xff]
        %v869 = vld [vmem:[%s1 + $0x20] sm:$0xff]
        %v870 = vld [vmem:[%s1 + $0x28] sm:$0xff]
        %v871 = vld [vmem:[%s1 + $0x30] sm:$0xff]
        %v872 = vld [vmem:[%s1 + $0x38] sm:$0xff]
        %v873 = vld [vmem:[%s1 + $0x40] sm:$0xff]
        %v874 = vld [vmem:[%s1 + $0x48] sm:$0xff]
        %v875 = vld [vmem:[%s1 + $0x50] sm:$0xff]
        %v876 = vld [vmem:[%s1 + $0x58] sm:$0xff]
        %v877 = vld [vmem:[%s1 + $0x60] sm:$0xff]
        %v878 = vld [vmem:[%s1 + $0x68] sm:$0xff]
        %v879 = vld [vmem:[%s1 + $0x70] sm:$0xff]
        %v880 = vld [vmem:[%s1 + $0x78] sm:$0xff]
        %v881 = vld [vmem:[%s157 + $0x3] sm:$0x1]
        %v882 = vlaneseq
        %v883 = vshrl.u32 %v882, 7
        %v884 = vsub.s32 0, %v883
        %v885 = vrot.slane %v881, %v884
        %887 = vset.pattern.permute.xlu0 0
        %888 = vperm.xlu0 %887, %v865
        %v889 = vpop.permute.xlu0 %888
        %892 = vset.pattern.permute.xlu0 0
        %893 = vperm.xlu0 %892, %v866
        %v894 = vpop.permute.xlu0 %893
        %897 = vset.pattern.permute.xlu0 0
        %898 = vperm.xlu0 %897, %v867
        %v899 = vpop.permute.xlu0 %898
        %902 = vset.pattern.permute.xlu0 0
        %903 = vperm.xlu0 %902, %v868
        %v904 = vpop.permute.xlu0 %903
        %907 = vset.pattern.permute.xlu0 0
        %908 = vperm.xlu0 %907, %v869
        %v909 = vpop.permute.xlu0 %908
        %912 = vset.pattern.permute.xlu0 0
        %913 = vperm.xlu0 %912, %v870
        %v914 = vpop.permute.xlu0 %913
        %917 = vset.pattern.permute.xlu0 0
        %918 = vperm.xlu0 %917, %v871
        %v919 = vpop.permute.xlu0 %918
        %922 = vset.pattern.permute.xlu0 0
        %923 = vperm.xlu0 %922, %v872
        %v924 = vpop.permute.xlu0 %923
        %927 = vset.pattern.permute.xlu0 0
        %928 = vperm.xlu0 %927, %v873
        %v929 = vpop.permute.xlu0 %928
        %932 = vset.pattern.permute.xlu0 0
        %933 = vperm.xlu0 %932, %v874
        %v934 = vpop.permute.xlu0 %933
        %937 = vset.pattern.permute.xlu0 0
        %938 = vperm.xlu0 %937, %v875
        %v939 = vpop.permute.xlu0 %938
        %942 = vset.pattern.permute.xlu0 0
        %943 = vperm.xlu0 %942, %v876
        %v944 = vpop.permute.xlu0 %943
        %947 = vset.pattern.permute.xlu0 0
        %948 = vperm.xlu0 %947, %v877
        %v949 = vpop.permute.xlu0 %948
        %952 = vset.pattern.permute.xlu0 0
        %953 = vperm.xlu0 %952, %v878
        %v954 = vpop.permute.xlu0 %953
        %957 = vset.pattern.permute.xlu0 0
        %958 = vperm.xlu0 %957, %v879
        %v959 = vpop.permute.xlu0 %958
        %962 = vset.pattern.permute.xlu0 0
        %963 = vperm.xlu0 %962, %v880
        %v964 = vpop.permute.xlu0 %963
        %v966 = vsub.f32 %v885, %v889
        %v967 = vsub.f32 %v885, %v894
        %v968 = vsub.f32 %v885, %v899
        %v969 = vsub.f32 %v885, %v904
        %v970 = vsub.f32 %v885, %v909
        %v971 = vsub.f32 %v885, %v914
        %v972 = vsub.f32 %v885, %v919
        %v973 = vsub.f32 %v885, %v924
        %v974 = vsub.f32 %v885, %v929
        %v975 = vsub.f32 %v885, %v934
        %v976 = vsub.f32 %v885, %v939
        %v977 = vsub.f32 %v885, %v944
        %v978 = vsub.f32 %v885, %v949
        %v979 = vsub.f32 %v885, %v954
        %v980 = vsub.f32 %v885, %v959
        %v981 = vsub.f32 %v885, %v964
        %v982 = vmul.f32 %v966, -50.0
        %v983 = vmul.f32 %v967, -50.0
        %v984 = vmul.f32 %v968, -50.0
        %v985 = vmul.f32 %v969, -50.0
        %v986 = vmul.f32 %v970, -50.0
        %v987 = vmul.f32 %v971, -50.0
        %v988 = vmul.f32 %v972, -50.0
        %v989 = vmul.f32 %v973, -50.0
        %v990 = vmul.f32 %v974, -50.0
        %v991 = vmul.f32 %v975, -50.0
        %v992 = vmul.f32 %v976, -50.0
        %v993 = vmul.f32 %v977, -50.0
        %v994 = vmul.f32 %v978, -50.0
        %v995 = vmul.f32 %v979, -50.0
        %v996 = vmul.f32 %v980, -50.0
        %v997 = vmul.f32 %v981, -50.0
        %v998 = vmul.f32 %v982, %v966
        %v999 = vmul.f32 %v983, %v967
        %v1000 = vmul.f32 %v984, %v968
        %v1001 = vmul.f32 %v985, %v969
        %v1002 = vmul.f32 %v986, %v970
        %v1003 = vmul.f32 %v987, %v971
        %v1004 = vmul.f32 %v988, %v972
        %v1005 = vmul.f32 %v989, %v973
        %v1006 = vmul.f32 %v990, %v974
        %v1007 = vmul.f32 %v991, %v975
        %v1008 = vmul.f32 %v992, %v976
        %v1009 = vmul.f32 %v993, %v977
        %v1010 = vmul.f32 %v994, %v978
        %v1011 = vmul.f32 %v995, %v979
        %v1012 = vmul.f32 %v996, %v980
        %v1013 = vmul.f32 %v997, %v981
        %v1014 = vmul.f32 %v998, 1.442695
        %v1015 = vpow.pop %v1014
        %v1016 = vmul.f32 %v999, 1.442695
        %v1017 = vpow.pop %v1016
        %v1018 = vmul.f32 %v1000, 1.442695
        %v1019 = vpow.pop %v1018
        %v1020 = vmul.f32 %v1001, 1.442695
        %v1021 = vpow.pop %v1020
        %v1022 = vmul.f32 %v1002, 1.442695
        %v1023 = vpow.pop %v1022
        %v1024 = vmul.f32 %v1003, 1.442695
        %v1025 = vpow.pop %v1024
        %v1026 = vmul.f32 %v1004, 1.442695
        %v1027 = vpow.pop %v1026
        %v1028 = vmul.f32 %v1005, 1.442695
        %v1029 = vpow.pop %v1028
        %v1030 = vmul.f32 %v1006, 1.442695
        %v1031 = vpow.pop %v1030
        %v1032 = vmul.f32 %v1007, 1.442695
        %v1033 = vpow.pop %v1032
        %v1034 = vmul.f32 %v1008, 1.442695
        %v1035 = vpow.pop %v1034
        %v1036 = vmul.f32 %v1009, 1.442695
        %v1037 = vpow.pop %v1036
        %v1038 = vmul.f32 %v1010, 1.442695
        %v1039 = vpow.pop %v1038
        %v1040 = vmul.f32 %v1011, 1.442695
        %v1041 = vpow.pop %v1040
        %v1042 = vmul.f32 %v1012, 1.442695
        %v1043 = vpow.pop %v1042
        %v1044 = vmul.f32 %v1013, 1.442695
        %v1045 = vpow.pop %v1044
        %v1046 = vld [vmem:[#allocation2] sm:$0xff]
        %v1047 = vld [vmem:[#allocation2 + $0x8] sm:$0xff]
        %v1048 = vld [vmem:[#allocation2 + $0x10] sm:$0xff]
        %v1049 = vld [vmem:[#allocation2 + $0x18] sm:$0xff]
        %v1050 = vld [vmem:[#allocation2 + $0x20] sm:$0xff]
        %v1051 = vld [vmem:[#allocation2 + $0x28] sm:$0xff]
        %v1052 = vld [vmem:[#allocation2 + $0x30] sm:$0xff]
        %v1053 = vld [vmem:[#allocation2 + $0x38] sm:$0xff]
        %v1054 = vld [vmem:[#allocation2 + $0x40] sm:$0xff]
        %v1055 = vld [vmem:[#allocation2 + $0x48] sm:$0xff]
        %v1056 = vld [vmem:[#allocation2 + $0x50] sm:$0xff]
        %v1057 = vld [vmem:[#allocation2 + $0x58] sm:$0xff]
        %v1058 = vld [vmem:[#allocation2 + $0x60] sm:$0xff]
        %v1059 = vld [vmem:[#allocation2 + $0x68] sm:$0xff]
        %v1060 = vld [vmem:[#allocation2 + $0x70] sm:$0xff]
        %v1061 = vld [vmem:[#allocation2 + $0x78] sm:$0xff]
        %v1062 = vadd.f32 %v1046, %v1015
        %v1063 = vadd.f32 %v1047, %v1017
        %v1064 = vadd.f32 %v1048, %v1019
        %v1065 = vadd.f32 %v1049, %v1021
        %v1066 = vadd.f32 %v1050, %v1023
        %v1067 = vadd.f32 %v1051, %v1025
        %v1068 = vadd.f32 %v1052, %v1027
        %v1069 = vadd.f32 %v1053, %v1029
        %v1070 = vadd.f32 %v1054, %v1031
        %v1071 = vadd.f32 %v1055, %v1033
        %v1072 = vadd.f32 %v1056, %v1035
        %v1073 = vadd.f32 %v1057, %v1037
        %v1074 = vadd.f32 %v1058, %v1039
        %v1075 = vadd.f32 %v1059, %v1041
        %v1076 = vadd.f32 %v1060, %v1043
        %v1077 = vadd.f32 %v1061, %v1045
        %1078 = vst [vmem:[#allocation2] sm:$0xff] %v1062
        %1079 = vst [vmem:[#allocation2 + $0x8] sm:$0xff] %v1063
        %1080 = vst [vmem:[#allocation2 + $0x10] sm:$0xff] %v1064
        %1081 = vst [vmem:[#allocation2 + $0x18] sm:$0xff] %v1065
        %1082 = vst [vmem:[#allocation2 + $0x20] sm:$0xff] %v1066
        %1083 = vst [vmem:[#allocation2 + $0x28] sm:$0xff] %v1067
        %1084 = vst [vmem:[#allocation2 + $0x30] sm:$0xff] %v1068
        %1085 = vst [vmem:[#allocation2 + $0x38] sm:$0xff] %v1069
        %1086 = vst [vmem:[#allocation2 + $0x40] sm:$0xff] %v1070
        %1087 = vst [vmem:[#allocation2 + $0x48] sm:$0xff] %v1071
        %1088 = vst [vmem:[#allocation2 + $0x50] sm:$0xff] %v1072
        %1089 = vst [vmem:[#allocation2 + $0x58] sm:$0xff] %v1073
        %1090 = vst [vmem:[#allocation2 + $0x60] sm:$0xff] %v1074
        %1091 = vst [vmem:[#allocation2 + $0x68] sm:$0xff] %v1075
        %1092 = vst [vmem:[#allocation2 + $0x70] sm:$0xff] %v1076
        %1093 = vst [vmem:[#allocation2 + $0x78] sm:$0xff] %v1077
        %v1094 = vld [vmem:[%s1] sm:$0xff]
        %v1095 = vld [vmem:[%s1 + $0x8] sm:$0xff]
        %v1096 = vld [vmem:[%s1 + $0x10] sm:$0xff]
        %v1097 = vld [vmem:[%s1 + $0x18] sm:$0xff]
        %v1098 = vld [vmem:[%s1 + $0x20] sm:$0xff]
        %v1099 = vld [vmem:[%s1 + $0x28] sm:$0xff]
        %v1100 = vld [vmem:[%s1 + $0x30] sm:$0xff]
        %v1101 = vld [vmem:[%s1 + $0x38] sm:$0xff]
        %v1102 = vld [vmem:[%s1 + $0x40] sm:$0xff]
        %v1103 = vld [vmem:[%s1 + $0x48] sm:$0xff]
        %v1104 = vld [vmem:[%s1 + $0x50] sm:$0xff]
        %v1105 = vld [vmem:[%s1 + $0x58] sm:$0xff]
        %v1106 = vld [vmem:[%s1 + $0x60] sm:$0xff]
        %v1107 = vld [vmem:[%s1 + $0x68] sm:$0xff]
        %v1108 = vld [vmem:[%s1 + $0x70] sm:$0xff]
        %v1109 = vld [vmem:[%s1 + $0x78] sm:$0xff]
        %v1110 = vld [vmem:[%s157 + $0x4] sm:$0x1]
        %v1111 = vlaneseq
        %v1112 = vshrl.u32 %v1111, 7
        %v1113 = vsub.s32 0, %v1112
        %v1114 = vrot.slane %v1110, %v1113
        %1116 = vset.pattern.permute.xlu0 0
        %1117 = vperm.xlu0 %1116, %v1094
        %v1118 = vpop.permute.xlu0 %1117
        %1121 = vset.pattern.permute.xlu0 0
        %1122 = vperm.xlu0 %1121, %v1095
        %v1123 = vpop.permute.xlu0 %1122
        %1126 = vset.pattern.permute.xlu0 0
        %1127 = vperm.xlu0 %1126, %v1096
        %v1128 = vpop.permute.xlu0 %1127
        %1131 = vset.pattern.permute.xlu0 0
        %1132 = vperm.xlu0 %1131, %v1097
        %v1133 = vpop.permute.xlu0 %1132
        %1136 = vset.pattern.permute.xlu0 0
        %1137 = vperm.xlu0 %1136, %v1098
        %v1138 = vpop.permute.xlu0 %1137
        %1141 = vset.pattern.permute.xlu0 0
        %1142 = vperm.xlu0 %1141, %v1099
        %v1143 = vpop.permute.xlu0 %1142
        %1146 = vset.pattern.permute.xlu0 0
        %1147 = vperm.xlu0 %1146, %v1100
        %v1148 = vpop.permute.xlu0 %1147
        %1151 = vset.pattern.permute.xlu0 0
        %1152 = vperm.xlu0 %1151, %v1101
        %v1153 = vpop.permute.xlu0 %1152
        %1156 = vset.pattern.permute.xlu0 0
        %1157 = vperm.xlu0 %1156, %v1102
        %v1158 = vpop.permute.xlu0 %1157
        %1161 = vset.pattern.permute.xlu0 0
        %1162 = vperm.xlu0 %1161, %v1103
        %v1163 = vpop.permute.xlu0 %1162
        %1166 = vset.pattern.permute.xlu0 0
        %1167 = vperm.xlu0 %1166, %v1104
        %v1168 = vpop.permute.xlu0 %1167
        %1171 = vset.pattern.permute.xlu0 0
        %1172 = vperm.xlu0 %1171, %v1105
        %v1173 = vpop.permute.xlu0 %1172
        %1176 = vset.pattern.permute.xlu0 0
        %1177 = vperm.xlu0 %1176, %v1106
        %v1178 = vpop.permute.xlu0 %1177
        %1181 = vset.pattern.permute.xlu0 0
        %1182 = vperm.xlu0 %1181, %v1107
        %v1183 = vpop.permute.xlu0 %1182
        %1186 = vset.pattern.permute.xlu0 0
        %1187 = vperm.xlu0 %1186, %v1108
        %v1188 = vpop.permute.xlu0 %1187
        %1191 = vset.pattern.permute.xlu0 0
        %1192 = vperm.xlu0 %1191, %v1109
        %v1193 = vpop.permute.xlu0 %1192
        %v1195 = vsub.f32 %v1114, %v1118
        %v1196 = vsub.f32 %v1114, %v1123
        %v1197 = vsub.f32 %v1114, %v1128
        %v1198 = vsub.f32 %v1114, %v1133
        %v1199 = vsub.f32 %v1114, %v1138
        %v1200 = vsub.f32 %v1114, %v1143
        %v1201 = vsub.f32 %v1114, %v1148
        %v1202 = vsub.f32 %v1114, %v1153
        %v1203 = vsub.f32 %v1114, %v1158
        %v1204 = vsub.f32 %v1114, %v1163
        %v1205 = vsub.f32 %v1114, %v1168
        %v1206 = vsub.f32 %v1114, %v1173
        %v1207 = vsub.f32 %v1114, %v1178
        %v1208 = vsub.f32 %v1114, %v1183
        %v1209 = vsub.f32 %v1114, %v1188
        %v1210 = vsub.f32 %v1114, %v1193
        %v1211 = vmul.f32 %v1195, -50.0
        %v1212 = vmul.f32 %v1196, -50.0
        %v1213 = vmul.f32 %v1197, -50.0
        %v1214 = vmul.f32 %v1198, -50.0
        %v1215 = vmul.f32 %v1199, -50.0
        %v1216 = vmul.f32 %v1200, -50.0
        %v1217 = vmul.f32 %v1201, -50.0
        %v1218 = vmul.f32 %v1202, -50.0
        %v1219 = vmul.f32 %v1203, -50.0
        %v1220 = vmul.f32 %v1204, -50.0
        %v1221 = vmul.f32 %v1205, -50.0
        %v1222 = vmul.f32 %v1206, -50.0
        %v1223 = vmul.f32 %v1207, -50.0
        %v1224 = vmul.f32 %v1208, -50.0
        %v1225 = vmul.f32 %v1209, -50.0
        %v1226 = vmul.f32 %v1210, -50.0
        %v1227 = vmul.f32 %v1211, %v1195
        %v1228 = vmul.f32 %v1212, %v1196
        %v1229 = vmul.f32 %v1213, %v1197
        %v1230 = vmul.f32 %v1214, %v1198
        %v1231 = vmul.f32 %v1215, %v1199
        %v1232 = vmul.f32 %v1216, %v1200
        %v1233 = vmul.f32 %v1217, %v1201
        %v1234 = vmul.f32 %v1218, %v1202
        %v1235 = vmul.f32 %v1219, %v1203
        %v1236 = vmul.f32 %v1220, %v1204
        %v1237 = vmul.f32 %v1221, %v1205
        %v1238 = vmul.f32 %v1222, %v1206
        %v1239 = vmul.f32 %v1223, %v1207
        %v1240 = vmul.f32 %v1224, %v1208
        %v1241 = vmul.f32 %v1225, %v1209
        %v1242 = vmul.f32 %v1226, %v1210
        %v1243 = vmul.f32 %v1227, 1.442695
        %v1244 = vpow.pop %v1243
        %v1245 = vmul.f32 %v1228, 1.442695
        %v1246 = vpow.pop %v1245
        %v1247 = vmul.f32 %v1229, 1.442695
        %v1248 = vpow.pop %v1247
        %v1249 = vmul.f32 %v1230, 1.442695
        %v1250 = vpow.pop %v1249
        %v1251 = vmul.f32 %v1231, 1.442695
        %v1252 = vpow.pop %v1251
        %v1253 = vmul.f32 %v1232, 1.442695
        %v1254 = vpow.pop %v1253
        %v1255 = vmul.f32 %v1233, 1.442695
        %v1256 = vpow.pop %v1255
        %v1257 = vmul.f32 %v1234, 1.442695
        %v1258 = vpow.pop %v1257
        %v1259 = vmul.f32 %v1235, 1.442695
        %v1260 = vpow.pop %v1259
        %v1261 = vmul.f32 %v1236, 1.442695
        %v1262 = vpow.pop %v1261
        %v1263 = vmul.f32 %v1237, 1.442695
        %v1264 = vpow.pop %v1263
        %v1265 = vmul.f32 %v1238, 1.442695
        %v1266 = vpow.pop %v1265
        %v1267 = vmul.f32 %v1239, 1.442695
        %v1268 = vpow.pop %v1267
        %v1269 = vmul.f32 %v1240, 1.442695
        %v1270 = vpow.pop %v1269
        %v1271 = vmul.f32 %v1241, 1.442695
        %v1272 = vpow.pop %v1271
        %v1273 = vmul.f32 %v1242, 1.442695
        %v1274 = vpow.pop %v1273
        %v1275 = vld [vmem:[#allocation2] sm:$0xff]
        %v1276 = vld [vmem:[#allocation2 + $0x8] sm:$0xff]
        %v1277 = vld [vmem:[#allocation2 + $0x10] sm:$0xff]
        %v1278 = vld [vmem:[#allocation2 + $0x18] sm:$0xff]
        %v1279 = vld [vmem:[#allocation2 + $0x20] sm:$0xff]
        %v1280 = vld [vmem:[#allocation2 + $0x28] sm:$0xff]
        %v1281 = vld [vmem:[#allocation2 + $0x30] sm:$0xff]
        %v1282 = vld [vmem:[#allocation2 + $0x38] sm:$0xff]
        %v1283 = vld [vmem:[#allocation2 + $0x40] sm:$0xff]
        %v1284 = vld [vmem:[#allocation2 + $0x48] sm:$0xff]
        %v1285 = vld [vmem:[#allocation2 + $0x50] sm:$0xff]
        %v1286 = vld [vmem:[#allocation2 + $0x58] sm:$0xff]
        %v1287 = vld [vmem:[#allocation2 + $0x60] sm:$0xff]
        %v1288 = vld [vmem:[#allocation2 + $0x68] sm:$0xff]
        %v1289 = vld [vmem:[#allocation2 + $0x70] sm:$0xff]
        %v1290 = vld [vmem:[#allocation2 + $0x78] sm:$0xff]
        %v1291 = vadd.f32 %v1275, %v1244
        %v1292 = vadd.f32 %v1276, %v1246
        %v1293 = vadd.f32 %v1277, %v1248
        %v1294 = vadd.f32 %v1278, %v1250
        %v1295 = vadd.f32 %v1279, %v1252
        %v1296 = vadd.f32 %v1280, %v1254
        %v1297 = vadd.f32 %v1281, %v1256
        %v1298 = vadd.f32 %v1282, %v1258
        %v1299 = vadd.f32 %v1283, %v1260
        %v1300 = vadd.f32 %v1284, %v1262
        %v1301 = vadd.f32 %v1285, %v1264
        %v1302 = vadd.f32 %v1286, %v1266
        %v1303 = vadd.f32 %v1287, %v1268
        %v1304 = vadd.f32 %v1288, %v1270
        %v1305 = vadd.f32 %v1289, %v1272
        %v1306 = vadd.f32 %v1290, %v1274
        %1307 = vst [vmem:[#allocation2] sm:$0xff] %v1291
        %1308 = vst [vmem:[#allocation2 + $0x8] sm:$0xff] %v1292
        %1309 = vst [vmem:[#allocation2 + $0x10] sm:$0xff] %v1293
        %1310 = vst [vmem:[#allocation2 + $0x18] sm:$0xff] %v1294
        %1311 = vst [vmem:[#allocation2 + $0x20] sm:$0xff] %v1295
        %1312 = vst [vmem:[#allocation2 + $0x28] sm:$0xff] %v1296
        %1313 = vst [vmem:[#allocation2 + $0x30] sm:$0xff] %v1297
        %1314 = vst [vmem:[#allocation2 + $0x38] sm:$0xff] %v1298
        %1315 = vst [vmem:[#allocation2 + $0x40] sm:$0xff] %v1299
        %1316 = vst [vmem:[#allocation2 + $0x48] sm:$0xff] %v1300
        %1317 = vst [vmem:[#allocation2 + $0x50] sm:$0xff] %v1301
        %1318 = vst [vmem:[#allocation2 + $0x58] sm:$0xff] %v1302
        %1319 = vst [vmem:[#allocation2 + $0x60] sm:$0xff] %v1303
        %1320 = vst [vmem:[#allocation2 + $0x68] sm:$0xff] %v1304
        %1321 = vst [vmem:[#allocation2 + $0x70] sm:$0xff] %v1305
        %1322 = vst [vmem:[#allocation2 + $0x78] sm:$0xff] %v1306
        %v1323 = vld [vmem:[%s1] sm:$0xff]
        %v1324 = vld [vmem:[%s1 + $0x8] sm:$0xff]
        %v1325 = vld [vmem:[%s1 + $0x10] sm:$0xff]
        %v1326 = vld [vmem:[%s1 + $0x18] sm:$0xff]
        %v1327 = vld [vmem:[%s1 + $0x20] sm:$0xff]
        %v1328 = vld [vmem:[%s1 + $0x28] sm:$0xff]
        %v1329 = vld [vmem:[%s1 + $0x30] sm:$0xff]
        %v1330 = vld [vmem:[%s1 + $0x38] sm:$0xff]
        %v1331 = vld [vmem:[%s1 + $0x40] sm:$0xff]
        %v1332 = vld [vmem:[%s1 + $0x48] sm:$0xff]
        %v1333 = vld [vmem:[%s1 + $0x50] sm:$0xff]
        %v1334 = vld [vmem:[%s1 + $0x58] sm:$0xff]
        %v1335 = vld [vmem:[%s1 + $0x60] sm:$0xff]
        %v1336 = vld [vmem:[%s1 + $0x68] sm:$0xff]
        %v1337 = vld [vmem:[%s1 + $0x70] sm:$0xff]
        %v1338 = vld [vmem:[%s1 + $0x78] sm:$0xff]
        %v1339 = vld [vmem:[%s157 + $0x5] sm:$0x1]
        %v1340 = vlaneseq
        %v1341 = vshrl.u32 %v1340, 7
        %v1342 = vsub.s32 0, %v1341
        %v1343 = vrot.slane %v1339, %v1342
        %1345 = vset.pattern.permute.xlu0 0
        %1346 = vperm.xlu0 %1345, %v1323
        %v1347 = vpop.permute.xlu0 %1346
        %1350 = vset.pattern.permute.xlu0 0
        %1351 = vperm.xlu0 %1350, %v1324
        %v1352 = vpop.permute.xlu0 %1351
        %1355 = vset.pattern.permute.xlu0 0
        %1356 = vperm.xlu0 %1355, %v1325
        %v1357 = vpop.permute.xlu0 %1356
        %1360 = vset.pattern.permute.xlu0 0
        %1361 = vperm.xlu0 %1360, %v1326
        %v1362 = vpop.permute.xlu0 %1361
        %1365 = vset.pattern.permute.xlu0 0
        %1366 = vperm.xlu0 %1365, %v1327
        %v1367 = vpop.permute.xlu0 %1366
        %1370 = vset.pattern.permute.xlu0 0
        %1371 = vperm.xlu0 %1370, %v1328
        %v1372 = vpop.permute.xlu0 %1371
        %1375 = vset.pattern.permute.xlu0 0
        %1376 = vperm.xlu0 %1375, %v1329
        %v1377 = vpop.permute.xlu0 %1376
        %1380 = vset.pattern.permute.xlu0 0
        %1381 = vperm.xlu0 %1380, %v1330
        %v1382 = vpop.permute.xlu0 %1381
        %1385 = vset.pattern.permute.xlu0 0
        %1386 = vperm.xlu0 %1385, %v1331
        %v1387 = vpop.permute.xlu0 %1386
        %1390 = vset.pattern.permute.xlu0 0
        %1391 = vperm.xlu0 %1390, %v1332
        %v1392 = vpop.permute.xlu0 %1391
        %1395 = vset.pattern.permute.xlu0 0
        %1396 = vperm.xlu0 %1395, %v1333
        %v1397 = vpop.permute.xlu0 %1396
        %1400 = vset.pattern.permute.xlu0 0
        %1401 = vperm.xlu0 %1400, %v1334
        %v1402 = vpop.permute.xlu0 %1401
        %1405 = vset.pattern.permute.xlu0 0
        %1406 = vperm.xlu0 %1405, %v1335
        %v1407 = vpop.permute.xlu0 %1406
        %1410 = vset.pattern.permute.xlu0 0
        %1411 = vperm.xlu0 %1410, %v1336
        %v1412 = vpop.permute.xlu0 %1411
        %1415 = vset.pattern.permute.xlu0 0
        %1416 = vperm.xlu0 %1415, %v1337
        %v1417 = vpop.permute.xlu0 %1416
        %1420 = vset.pattern.permute.xlu0 0
        %1421 = vperm.xlu0 %1420, %v1338
        %v1422 = vpop.permute.xlu0 %1421
        %v1424 = vsub.f32 %v1343, %v1347
        %v1425 = vsub.f32 %v1343, %v1352
        %v1426 = vsub.f32 %v1343, %v1357
        %v1427 = vsub.f32 %v1343, %v1362
        %v1428 = vsub.f32 %v1343, %v1367
        %v1429 = vsub.f32 %v1343, %v1372
        %v1430 = vsub.f32 %v1343, %v1377
        %v1431 = vsub.f32 %v1343, %v1382
        %v1432 = vsub.f32 %v1343, %v1387
        %v1433 = vsub.f32 %v1343, %v1392
        %v1434 = vsub.f32 %v1343, %v1397
        %v1435 = vsub.f32 %v1343, %v1402
        %v1436 = vsub.f32 %v1343, %v1407
        %v1437 = vsub.f32 %v1343, %v1412
        %v1438 = vsub.f32 %v1343, %v1417
        %v1439 = vsub.f32 %v1343, %v1422
        %v1440 = vmul.f32 %v1424, -50.0
        %v1441 = vmul.f32 %v1425, -50.0
        %v1442 = vmul.f32 %v1426, -50.0
        %v1443 = vmul.f32 %v1427, -50.0
        %v1444 = vmul.f32 %v1428, -50.0
        %v1445 = vmul.f32 %v1429, -50.0
        %v1446 = vmul.f32 %v1430, -50.0
        %v1447 = vmul.f32 %v1431, -50.0
        %v1448 = vmul.f32 %v1432, -50.0
        %v1449 = vmul.f32 %v1433, -50.0
        %v1450 = vmul.f32 %v1434, -50.0
        %v1451 = vmul.f32 %v1435, -50.0
        %v1452 = vmul.f32 %v1436, -50.0
        %v1453 = vmul.f32 %v1437, -50.0
        %v1454 = vmul.f32 %v1438, -50.0
        %v1455 = vmul.f32 %v1439, -50.0
        %v1456 = vmul.f32 %v1440, %v1424
        %v1457 = vmul.f32 %v1441, %v1425
        %v1458 = vmul.f32 %v1442, %v1426
        %v1459 = vmul.f32 %v1443, %v1427
        %v1460 = vmul.f32 %v1444, %v1428
        %v1461 = vmul.f32 %v1445, %v1429
        %v1462 = vmul.f32 %v1446, %v1430
        %v1463 = vmul.f32 %v1447, %v1431
        %v1464 = vmul.f32 %v1448, %v1432
        %v1465 = vmul.f32 %v1449, %v1433
        %v1466 = vmul.f32 %v1450, %v1434
        %v1467 = vmul.f32 %v1451, %v1435
        %v1468 = vmul.f32 %v1452, %v1436
        %v1469 = vmul.f32 %v1453, %v1437
        %v1470 = vmul.f32 %v1454, %v1438
        %v1471 = vmul.f32 %v1455, %v1439
        %v1472 = vmul.f32 %v1456, 1.442695
        %v1473 = vpow.pop %v1472
        %v1474 = vmul.f32 %v1457, 1.442695
        %v1475 = vpow.pop %v1474
        %v1476 = vmul.f32 %v1458, 1.442695
        %v1477 = vpow.pop %v1476
        %v1478 = vmul.f32 %v1459, 1.442695
        %v1479 = vpow.pop %v1478
        %v1480 = vmul.f32 %v1460, 1.442695
        %v1481 = vpow.pop %v1480
        %v1482 = vmul.f32 %v1461, 1.442695
        %v1483 = vpow.pop %v1482
        %v1484 = vmul.f32 %v1462, 1.442695
        %v1485 = vpow.pop %v1484
        %v1486 = vmul.f32 %v1463, 1.442695
        %v1487 = vpow.pop %v1486
        %v1488 = vmul.f32 %v1464, 1.442695
        %v1489 = vpow.pop %v1488
        %v1490 = vmul.f32 %v1465, 1.442695
        %v1491 = vpow.pop %v1490
        %v1492 = vmul.f32 %v1466, 1.442695
        %v1493 = vpow.pop %v1492
        %v1494 = vmul.f32 %v1467, 1.442695
        %v1495 = vpow.pop %v1494
        %v1496 = vmul.f32 %v1468, 1.442695
        %v1497 = vpow.pop %v1496
        %v1498 = vmul.f32 %v1469, 1.442695
        %v1499 = vpow.pop %v1498
        %v1500 = vmul.f32 %v1470, 1.442695
        %v1501 = vpow.pop %v1500
        %v1502 = vmul.f32 %v1471, 1.442695
        %v1503 = vpow.pop %v1502
        %v1504 = vld [vmem:[#allocation2] sm:$0xff]
        %v1505 = vld [vmem:[#allocation2 + $0x8] sm:$0xff]
        %v1506 = vld [vmem:[#allocation2 + $0x10] sm:$0xff]
        %v1507 = vld [vmem:[#allocation2 + $0x18] sm:$0xff]
        %v1508 = vld [vmem:[#allocation2 + $0x20] sm:$0xff]
        %v1509 = vld [vmem:[#allocation2 + $0x28] sm:$0xff]
        %v1510 = vld [vmem:[#allocation2 + $0x30] sm:$0xff]
        %v1511 = vld [vmem:[#allocation2 + $0x38] sm:$0xff]
        %v1512 = vld [vmem:[#allocation2 + $0x40] sm:$0xff]
        %v1513 = vld [vmem:[#allocation2 + $0x48] sm:$0xff]
        %v1514 = vld [vmem:[#allocation2 + $0x50] sm:$0xff]
        %v1515 = vld [vmem:[#allocation2 + $0x58] sm:$0xff]
        %v1516 = vld [vmem:[#allocation2 + $0x60] sm:$0xff]
        %v1517 = vld [vmem:[#allocation2 + $0x68] sm:$0xff]
        %v1518 = vld [vmem:[#allocation2 + $0x70] sm:$0xff]
        %v1519 = vld [vmem:[#allocation2 + $0x78] sm:$0xff]
        %v1520 = vadd.f32 %v1504, %v1473
        %v1521 = vadd.f32 %v1505, %v1475
        %v1522 = vadd.f32 %v1506, %v1477
        %v1523 = vadd.f32 %v1507, %v1479
        %v1524 = vadd.f32 %v1508, %v1481
        %v1525 = vadd.f32 %v1509, %v1483
        %v1526 = vadd.f32 %v1510, %v1485
        %v1527 = vadd.f32 %v1511, %v1487
        %v1528 = vadd.f32 %v1512, %v1489
        %v1529 = vadd.f32 %v1513, %v1491
        %v1530 = vadd.f32 %v1514, %v1493
        %v1531 = vadd.f32 %v1515, %v1495
        %v1532 = vadd.f32 %v1516, %v1497
        %v1533 = vadd.f32 %v1517, %v1499
        %v1534 = vadd.f32 %v1518, %v1501
        %v1535 = vadd.f32 %v1519, %v1503
        %1536 = vst [vmem:[#allocation2] sm:$0xff] %v1520
        %1537 = vst [vmem:[#allocation2 + $0x8] sm:$0xff] %v1521
        %1538 = vst [vmem:[#allocation2 + $0x10] sm:$0xff] %v1522
        %1539 = vst [vmem:[#allocation2 + $0x18] sm:$0xff] %v1523
        %1540 = vst [vmem:[#allocation2 + $0x20] sm:$0xff] %v1524
        %1541 = vst [vmem:[#allocation2 + $0x28] sm:$0xff] %v1525
        %1542 = vst [vmem:[#allocation2 + $0x30] sm:$0xff] %v1526
        %1543 = vst [vmem:[#allocation2 + $0x38] sm:$0xff] %v1527
        %1544 = vst [vmem:[#allocation2 + $0x40] sm:$0xff] %v1528
        %1545 = vst [vmem:[#allocation2 + $0x48] sm:$0xff] %v1529
        %1546 = vst [vmem:[#allocation2 + $0x50] sm:$0xff] %v1530
        %1547 = vst [vmem:[#allocation2 + $0x58] sm:$0xff] %v1531
        %1548 = vst [vmem:[#allocation2 + $0x60] sm:$0xff] %v1532
        %1549 = vst [vmem:[#allocation2 + $0x68] sm:$0xff] %v1533
        %1550 = vst [vmem:[#allocation2 + $0x70] sm:$0xff] %v1534
        %1551 = vst [vmem:[#allocation2 + $0x78] sm:$0xff] %v1535
        %v1552 = vld [vmem:[%s1] sm:$0xff]
        %v1553 = vld [vmem:[%s1 + $0x8] sm:$0xff]
        %v1554 = vld [vmem:[%s1 + $0x10] sm:$0xff]
        %v1555 = vld [vmem:[%s1 + $0x18] sm:$0xff]
        %v1556 = vld [vmem:[%s1 + $0x20] sm:$0xff]
        %v1557 = vld [vmem:[%s1 + $0x28] sm:$0xff]
        %v1558 = vld [vmem:[%s1 + $0x30] sm:$0xff]
        %v1559 = vld [vmem:[%s1 + $0x38] sm:$0xff]
        %v1560 = vld [vmem:[%s1 + $0x40] sm:$0xff]
        %v1561 = vld [vmem:[%s1 + $0x48] sm:$0xff]
        %v1562 = vld [vmem:[%s1 + $0x50] sm:$0xff]
        %v1563 = vld [vmem:[%s1 + $0x58] sm:$0xff]
        %v1564 = vld [vmem:[%s1 + $0x60] sm:$0xff]
        %v1565 = vld [vmem:[%s1 + $0x68] sm:$0xff]
        %v1566 = vld [vmem:[%s1 + $0x70] sm:$0xff]
        %v1567 = vld [vmem:[%s1 + $0x78] sm:$0xff]
        %v1568 = vld [vmem:[%s157 + $0x6] sm:$0x1]
        %v1569 = vlaneseq
        %v1570 = vshrl.u32 %v1569, 7
        %v1571 = vsub.s32 0, %v1570
        %v1572 = vrot.slane %v1568, %v1571
        %1574 = vset.pattern.permute.xlu0 0
        %1575 = vperm.xlu0 %1574, %v1552
        %v1576 = vpop.permute.xlu0 %1575
        %1579 = vset.pattern.permute.xlu0 0
        %1580 = vperm.xlu0 %1579, %v1553
        %v1581 = vpop.permute.xlu0 %1580
        %1584 = vset.pattern.permute.xlu0 0
        %1585 = vperm.xlu0 %1584, %v1554
        %v1586 = vpop.permute.xlu0 %1585
        %1589 = vset.pattern.permute.xlu0 0
        %1590 = vperm.xlu0 %1589, %v1555
        %v1591 = vpop.permute.xlu0 %1590
        %1594 = vset.pattern.permute.xlu0 0
        %1595 = vperm.xlu0 %1594, %v1556
        %v1596 = vpop.permute.xlu0 %1595
        %1599 = vset.pattern.permute.xlu0 0
        %1600 = vperm.xlu0 %1599, %v1557
        %v1601 = vpop.permute.xlu0 %1600
        %1604 = vset.pattern.permute.xlu0 0
        %1605 = vperm.xlu0 %1604, %v1558
        %v1606 = vpop.permute.xlu0 %1605
        %1609 = vset.pattern.permute.xlu0 0
        %1610 = vperm.xlu0 %1609, %v1559
        %v1611 = vpop.permute.xlu0 %1610
        %1614 = vset.pattern.permute.xlu0 0
        %1615 = vperm.xlu0 %1614, %v1560
        %v1616 = vpop.permute.xlu0 %1615
        %1619 = vset.pattern.permute.xlu0 0
        %1620 = vperm.xlu0 %1619, %v1561
        %v1621 = vpop.permute.xlu0 %1620
        %1624 = vset.pattern.permute.xlu0 0
        %1625 = vperm.xlu0 %1624, %v1562
        %v1626 = vpop.permute.xlu0 %1625
        %1629 = vset.pattern.permute.xlu0 0
        %1630 = vperm.xlu0 %1629, %v1563
        %v1631 = vpop.permute.xlu0 %1630
        %1634 = vset.pattern.permute.xlu0 0
        %1635 = vperm.xlu0 %1634, %v1564
        %v1636 = vpop.permute.xlu0 %1635
        %1639 = vset.pattern.permute.xlu0 0
        %1640 = vperm.xlu0 %1639, %v1565
        %v1641 = vpop.permute.xlu0 %1640
        %1644 = vset.pattern.permute.xlu0 0
        %1645 = vperm.xlu0 %1644, %v1566
        %v1646 = vpop.permute.xlu0 %1645
        %1649 = vset.pattern.permute.xlu0 0
        %1650 = vperm.xlu0 %1649, %v1567
        %v1651 = vpop.permute.xlu0 %1650
        %v1653 = vsub.f32 %v1572, %v1576
        %v1654 = vsub.f32 %v1572, %v1581
        %v1655 = vsub.f32 %v1572, %v1586
        %v1656 = vsub.f32 %v1572, %v1591
        %v1657 = vsub.f32 %v1572, %v1596
        %v1658 = vsub.f32 %v1572, %v1601
        %v1659 = vsub.f32 %v1572, %v1606
        %v1660 = vsub.f32 %v1572, %v1611
        %v1661 = vsub.f32 %v1572, %v1616
        %v1662 = vsub.f32 %v1572, %v1621
        %v1663 = vsub.f32 %v1572, %v1626
        %v1664 = vsub.f32 %v1572, %v1631
        %v1665 = vsub.f32 %v1572, %v1636
        %v1666 = vsub.f32 %v1572, %v1641
        %v1667 = vsub.f32 %v1572, %v1646
        %v1668 = vsub.f32 %v1572, %v1651
        %v1669 = vmul.f32 %v1653, -50.0
        %v1670 = vmul.f32 %v1654, -50.0
        %v1671 = vmul.f32 %v1655, -50.0
        %v1672 = vmul.f32 %v1656, -50.0
        %v1673 = vmul.f32 %v1657, -50.0
        %v1674 = vmul.f32 %v1658, -50.0
        %v1675 = vmul.f32 %v1659, -50.0
        %v1676 = vmul.f32 %v1660, -50.0
        %v1677 = vmul.f32 %v1661, -50.0
        %v1678 = vmul.f32 %v1662, -50.0
        %v1679 = vmul.f32 %v1663, -50.0
        %v1680 = vmul.f32 %v1664, -50.0
        %v1681 = vmul.f32 %v1665, -50.0
        %v1682 = vmul.f32 %v1666, -50.0
        %v1683 = vmul.f32 %v1667, -50.0
        %v1684 = vmul.f32 %v1668, -50.0
        %v1685 = vmul.f32 %v1669, %v1653
        %v1686 = vmul.f32 %v1670, %v1654
        %v1687 = vmul.f32 %v1671, %v1655
        %v1688 = vmul.f32 %v1672, %v1656
        %v1689 = vmul.f32 %v1673, %v1657
        %v1690 = vmul.f32 %v1674, %v1658
        %v1691 = vmul.f32 %v1675, %v1659
        %v1692 = vmul.f32 %v1676, %v1660
        %v1693 = vmul.f32 %v1677, %v1661
        %v1694 = vmul.f32 %v1678, %v1662
        %v1695 = vmul.f32 %v1679, %v1663
        %v1696 = vmul.f32 %v1680, %v1664
        %v1697 = vmul.f32 %v1681, %v1665
        %v1698 = vmul.f32 %v1682, %v1666
        %v1699 = vmul.f32 %v1683, %v1667
        %v1700 = vmul.f32 %v1684, %v1668
        %v1701 = vmul.f32 %v1685, 1.442695
        %v1702 = vpow.pop %v1701
        %v1703 = vmul.f32 %v1686, 1.442695
        %v1704 = vpow.pop %v1703
        %v1705 = vmul.f32 %v1687, 1.442695
        %v1706 = vpow.pop %v1705
        %v1707 = vmul.f32 %v1688, 1.442695
        %v1708 = vpow.pop %v1707
        %v1709 = vmul.f32 %v1689, 1.442695
        %v1710 = vpow.pop %v1709
        %v1711 = vmul.f32 %v1690, 1.442695
        %v1712 = vpow.pop %v1711
        %v1713 = vmul.f32 %v1691, 1.442695
        %v1714 = vpow.pop %v1713
        %v1715 = vmul.f32 %v1692, 1.442695
        %v1716 = vpow.pop %v1715
        %v1717 = vmul.f32 %v1693, 1.442695
        %v1718 = vpow.pop %v1717
        %v1719 = vmul.f32 %v1694, 1.442695
        %v1720 = vpow.pop %v1719
        %v1721 = vmul.f32 %v1695, 1.442695
        %v1722 = vpow.pop %v1721
        %v1723 = vmul.f32 %v1696, 1.442695
        %v1724 = vpow.pop %v1723
        %v1725 = vmul.f32 %v1697, 1.442695
        %v1726 = vpow.pop %v1725
        %v1727 = vmul.f32 %v1698, 1.442695
        %v1728 = vpow.pop %v1727
        %v1729 = vmul.f32 %v1699, 1.442695
        %v1730 = vpow.pop %v1729
        %v1731 = vmul.f32 %v1700, 1.442695
        %v1732 = vpow.pop %v1731
        %v1733 = vld [vmem:[#allocation2] sm:$0xff]
        %v1734 = vld [vmem:[#allocation2 + $0x8] sm:$0xff]
        %v1735 = vld [vmem:[#allocation2 + $0x10] sm:$0xff]
        %v1736 = vld [vmem:[#allocation2 + $0x18] sm:$0xff]
        %v1737 = vld [vmem:[#allocation2 + $0x20] sm:$0xff]
        %v1738 = vld [vmem:[#allocation2 + $0x28] sm:$0xff]
        %v1739 = vld [vmem:[#allocation2 + $0x30] sm:$0xff]
        %v1740 = vld [vmem:[#allocation2 + $0x38] sm:$0xff]
        %v1741 = vld [vmem:[#allocation2 + $0x40] sm:$0xff]
        %v1742 = vld [vmem:[#allocation2 + $0x48] sm:$0xff]
        %v1743 = vld [vmem:[#allocation2 + $0x50] sm:$0xff]
        %v1744 = vld [vmem:[#allocation2 + $0x58] sm:$0xff]
        %v1745 = vld [vmem:[#allocation2 + $0x60] sm:$0xff]
        %v1746 = vld [vmem:[#allocation2 + $0x68] sm:$0xff]
        %v1747 = vld [vmem:[#allocation2 + $0x70] sm:$0xff]
        %v1748 = vld [vmem:[#allocation2 + $0x78] sm:$0xff]
        %v1749 = vadd.f32 %v1733, %v1702
        %v1750 = vadd.f32 %v1734, %v1704
        %v1751 = vadd.f32 %v1735, %v1706
        %v1752 = vadd.f32 %v1736, %v1708
        %v1753 = vadd.f32 %v1737, %v1710
        %v1754 = vadd.f32 %v1738, %v1712
        %v1755 = vadd.f32 %v1739, %v1714
        %v1756 = vadd.f32 %v1740, %v1716
        %v1757 = vadd.f32 %v1741, %v1718
        %v1758 = vadd.f32 %v1742, %v1720
        %v1759 = vadd.f32 %v1743, %v1722
        %v1760 = vadd.f32 %v1744, %v1724
        %v1761 = vadd.f32 %v1745, %v1726
        %v1762 = vadd.f32 %v1746, %v1728
        %v1763 = vadd.f32 %v1747, %v1730
        %v1764 = vadd.f32 %v1748, %v1732
        %1765 = vst [vmem:[#allocation2] sm:$0xff] %v1749
        %1766 = vst [vmem:[#allocation2 + $0x8] sm:$0xff] %v1750
        %1767 = vst [vmem:[#allocation2 + $0x10] sm:$0xff] %v1751
        %1768 = vst [vmem:[#allocation2 + $0x18] sm:$0xff] %v1752
        %1769 = vst [vmem:[#allocation2 + $0x20] sm:$0xff] %v1753
        %1770 = vst [vmem:[#allocation2 + $0x28] sm:$0xff] %v1754
        %1771 = vst [vmem:[#allocation2 + $0x30] sm:$0xff] %v1755
        %1772 = vst [vmem:[#allocation2 + $0x38] sm:$0xff] %v1756
        %1773 = vst [vmem:[#allocation2 + $0x40] sm:$0xff] %v1757
        %1774 = vst [vmem:[#allocation2 + $0x48] sm:$0xff] %v1758
        %1775 = vst [vmem:[#allocation2 + $0x50] sm:$0xff] %v1759
        %1776 = vst [vmem:[#allocation2 + $0x58] sm:$0xff] %v1760
        %1777 = vst [vmem:[#allocation2 + $0x60] sm:$0xff] %v1761
        %1778 = vst [vmem:[#allocation2 + $0x68] sm:$0xff] %v1762
        %1779 = vst [vmem:[#allocation2 + $0x70] sm:$0xff] %v1763
        %1780 = vst [vmem:[#allocation2 + $0x78] sm:$0xff] %v1764
        %v1781 = vld [vmem:[%s1] sm:$0xff]
        %v1782 = vld [vmem:[%s1 + $0x8] sm:$0xff]
        %v1783 = vld [vmem:[%s1 + $0x10] sm:$0xff]
        %v1784 = vld [vmem:[%s1 + $0x18] sm:$0xff]
        %v1785 = vld [vmem:[%s1 + $0x20] sm:$0xff]
        %v1786 = vld [vmem:[%s1 + $0x28] sm:$0xff]
        %v1787 = vld [vmem:[%s1 + $0x30] sm:$0xff]
        %v1788 = vld [vmem:[%s1 + $0x38] sm:$0xff]
        %v1789 = vld [vmem:[%s1 + $0x40] sm:$0xff]
        %v1790 = vld [vmem:[%s1 + $0x48] sm:$0xff]
        %v1791 = vld [vmem:[%s1 + $0x50] sm:$0xff]
        %v1792 = vld [vmem:[%s1 + $0x58] sm:$0xff]
        %v1793 = vld [vmem:[%s1 + $0x60] sm:$0xff]
        %v1794 = vld [vmem:[%s1 + $0x68] sm:$0xff]
        %v1795 = vld [vmem:[%s1 + $0x70] sm:$0xff]
        %v1796 = vld [vmem:[%s1 + $0x78] sm:$0xff]
        %v1797 = vld [vmem:[%s157 + $0x7] sm:$0x1]
        %v1798 = vlaneseq
        %v1799 = vshrl.u32 %v1798, 7
        %v1800 = vsub.s32 0, %v1799
        %v1801 = vrot.slane %v1797, %v1800
        %1803 = vset.pattern.permute.xlu0 0
        %1804 = vperm.xlu0 %1803, %v1781
        %v1805 = vpop.permute.xlu0 %1804
        %1808 = vset.pattern.permute.xlu0 0
        %1809 = vperm.xlu0 %1808, %v1782
        %v1810 = vpop.permute.xlu0 %1809
        %1813 = vset.pattern.permute.xlu0 0
        %1814 = vperm.xlu0 %1813, %v1783
        %v1815 = vpop.permute.xlu0 %1814
        %1818 = vset.pattern.permute.xlu0 0
        %1819 = vperm.xlu0 %1818, %v1784
        %v1820 = vpop.permute.xlu0 %1819
        %1823 = vset.pattern.permute.xlu0 0
        %1824 = vperm.xlu0 %1823, %v1785
        %v1825 = vpop.permute.xlu0 %1824
        %1828 = vset.pattern.permute.xlu0 0
        %1829 = vperm.xlu0 %1828, %v1786
        %v1830 = vpop.permute.xlu0 %1829
        %1833 = vset.pattern.permute.xlu0 0
        %1834 = vperm.xlu0 %1833, %v1787
        %v1835 = vpop.permute.xlu0 %1834
        %1838 = vset.pattern.permute.xlu0 0
        %1839 = vperm.xlu0 %1838, %v1788
        %v1840 = vpop.permute.xlu0 %1839
        %1843 = vset.pattern.permute.xlu0 0
        %1844 = vperm.xlu0 %1843, %v1789
        %v1845 = vpop.permute.xlu0 %1844
        %1848 = vset.pattern.permute.xlu0 0
        %1849 = vperm.xlu0 %1848, %v1790
        %v1850 = vpop.permute.xlu0 %1849
        %1853 = vset.pattern.permute.xlu0 0
        %1854 = vperm.xlu0 %1853, %v1791
        %v1855 = vpop.permute.xlu0 %1854
        %1858 = vset.pattern.permute.xlu0 0
        %1859 = vperm.xlu0 %1858, %v1792
        %v1860 = vpop.permute.xlu0 %1859
        %1863 = vset.pattern.permute.xlu0 0
        %1864 = vperm.xlu0 %1863, %v1793
        %v1865 = vpop.permute.xlu0 %1864
        %1868 = vset.pattern.permute.xlu0 0
        %1869 = vperm.xlu0 %1868, %v1794
        %v1870 = vpop.permute.xlu0 %1869
        %1873 = vset.pattern.permute.xlu0 0
        %1874 = vperm.xlu0 %1873, %v1795
        %v1875 = vpop.permute.xlu0 %1874
        %1878 = vset.pattern.permute.xlu0 0
        %1879 = vperm.xlu0 %1878, %v1796
        %v1880 = vpop.permute.xlu0 %1879
        %v1882 = vsub.f32 %v1801, %v1805
        %v1883 = vsub.f32 %v1801, %v1810
        %v1884 = vsub.f32 %v1801, %v1815
        %v1885 = vsub.f32 %v1801, %v1820
        %v1886 = vsub.f32 %v1801, %v1825
        %v1887 = vsub.f32 %v1801, %v1830
        %v1888 = vsub.f32 %v1801, %v1835
        %v1889 = vsub.f32 %v1801, %v1840
        %v1890 = vsub.f32 %v1801, %v1845
        %v1891 = vsub.f32 %v1801, %v1850
        %v1892 = vsub.f32 %v1801, %v1855
        %v1893 = vsub.f32 %v1801, %v1860
        %v1894 = vsub.f32 %v1801, %v1865
        %v1895 = vsub.f32 %v1801, %v1870
        %v1896 = vsub.f32 %v1801, %v1875
        %v1897 = vsub.f32 %v1801, %v1880
        %v1898 = vmul.f32 %v1882, -50.0
        %v1899 = vmul.f32 %v1883, -50.0
        %v1900 = vmul.f32 %v1884, -50.0
        %v1901 = vmul.f32 %v1885, -50.0
        %v1902 = vmul.f32 %v1886, -50.0
        %v1903 = vmul.f32 %v1887, -50.0
        %v1904 = vmul.f32 %v1888, -50.0
        %v1905 = vmul.f32 %v1889, -50.0
        %v1906 = vmul.f32 %v1890, -50.0
        %v1907 = vmul.f32 %v1891, -50.0
        %v1908 = vmul.f32 %v1892, -50.0
        %v1909 = vmul.f32 %v1893, -50.0
        %v1910 = vmul.f32 %v1894, -50.0
        %v1911 = vmul.f32 %v1895, -50.0
        %v1912 = vmul.f32 %v1896, -50.0
        %v1913 = vmul.f32 %v1897, -50.0
        %v1914 = vmul.f32 %v1898, %v1882
        %v1915 = vmul.f32 %v1899, %v1883
        %v1916 = vmul.f32 %v1900, %v1884
        %v1917 = vmul.f32 %v1901, %v1885
        %v1918 = vmul.f32 %v1902, %v1886
        %v1919 = vmul.f32 %v1903, %v1887
        %v1920 = vmul.f32 %v1904, %v1888
        %v1921 = vmul.f32 %v1905, %v1889
        %v1922 = vmul.f32 %v1906, %v1890
        %v1923 = vmul.f32 %v1907, %v1891
        %v1924 = vmul.f32 %v1908, %v1892
        %v1925 = vmul.f32 %v1909, %v1893
        %v1926 = vmul.f32 %v1910, %v1894
        %v1927 = vmul.f32 %v1911, %v1895
        %v1928 = vmul.f32 %v1912, %v1896
        %v1929 = vmul.f32 %v1913, %v1897
        %v1930 = vmul.f32 %v1914, 1.442695
        %v1931 = vpow.pop %v1930
        %v1932 = vmul.f32 %v1915, 1.442695
        %v1933 = vpow.pop %v1932
        %v1934 = vmul.f32 %v1916, 1.442695
        %v1935 = vpow.pop %v1934
        %v1936 = vmul.f32 %v1917, 1.442695
        %v1937 = vpow.pop %v1936
        %v1938 = vmul.f32 %v1918, 1.442695
        %v1939 = vpow.pop %v1938
        %v1940 = vmul.f32 %v1919, 1.442695
        %v1941 = vpow.pop %v1940
        %v1942 = vmul.f32 %v1920, 1.442695
        %v1943 = vpow.pop %v1942
        %v1944 = vmul.f32 %v1921, 1.442695
        %v1945 = vpow.pop %v1944
        %v1946 = vmul.f32 %v1922, 1.442695
        %v1947 = vpow.pop %v1946
        %v1948 = vmul.f32 %v1923, 1.442695
        %v1949 = vpow.pop %v1948
        %v1950 = vmul.f32 %v1924, 1.442695
        %v1951 = vpow.pop %v1950
        %v1952 = vmul.f32 %v1925, 1.442695
        %v1953 = vpow.pop %v1952
        %v1954 = vmul.f32 %v1926, 1.442695
        %v1955 = vpow.pop %v1954
        %v1956 = vmul.f32 %v1927, 1.442695
        %v1957 = vpow.pop %v1956
        %v1958 = vmul.f32 %v1928, 1.442695
        %v1959 = vpow.pop %v1958
        %v1960 = vmul.f32 %v1929, 1.442695
        %v1961 = vpow.pop %v1960
        %v1962 = vld [vmem:[#allocation2] sm:$0xff]
        %v1963 = vld [vmem:[#allocation2 + $0x8] sm:$0xff]
        %v1964 = vld [vmem:[#allocation2 + $0x10] sm:$0xff]
        %v1965 = vld [vmem:[#allocation2 + $0x18] sm:$0xff]
        %v1966 = vld [vmem:[#allocation2 + $0x20] sm:$0xff]
        %v1967 = vld [vmem:[#allocation2 + $0x28] sm:$0xff]
        %v1968 = vld [vmem:[#allocation2 + $0x30] sm:$0xff]
        %v1969 = vld [vmem:[#allocation2 + $0x38] sm:$0xff]
        %v1970 = vld [vmem:[#allocation2 + $0x40] sm:$0xff]
        %v1971 = vld [vmem:[#allocation2 + $0x48] sm:$0xff]
        %v1972 = vld [vmem:[#allocation2 + $0x50] sm:$0xff]
        %v1973 = vld [vmem:[#allocation2 + $0x58] sm:$0xff]
        %v1974 = vld [vmem:[#allocation2 + $0x60] sm:$0xff]
        %v1975 = vld [vmem:[#allocation2 + $0x68] sm:$0xff]
        %v1976 = vld [vmem:[#allocation2 + $0x70] sm:$0xff]
        %v1977 = vld [vmem:[#allocation2 + $0x78] sm:$0xff]
        %v1978 = vadd.f32 %v1962, %v1931
        %v1979 = vadd.f32 %v1963, %v1933
        %v1980 = vadd.f32 %v1964, %v1935
        %v1981 = vadd.f32 %v1965, %v1937
        %v1982 = vadd.f32 %v1966, %v1939
        %v1983 = vadd.f32 %v1967, %v1941
        %v1984 = vadd.f32 %v1968, %v1943
        %v1985 = vadd.f32 %v1969, %v1945
        %v1986 = vadd.f32 %v1970, %v1947
        %v1987 = vadd.f32 %v1971, %v1949
        %v1988 = vadd.f32 %v1972, %v1951
        %v1989 = vadd.f32 %v1973, %v1953
        %v1990 = vadd.f32 %v1974, %v1955
        %v1991 = vadd.f32 %v1975, %v1957
        %v1992 = vadd.f32 %v1976, %v1959
        %v1993 = vadd.f32 %v1977, %v1961
        %1994 = vst [vmem:[#allocation2] sm:$0xff] %v1978
        %1995 = vst [vmem:[#allocation2 + $0x8] sm:$0xff] %v1979
        %1996 = vst [vmem:[#allocation2 + $0x10] sm:$0xff] %v1980
        %1997 = vst [vmem:[#allocation2 + $0x18] sm:$0xff] %v1981
        %1998 = vst [vmem:[#allocation2 + $0x20] sm:$0xff] %v1982
        %1999 = vst [vmem:[#allocation2 + $0x28] sm:$0xff] %v1983
        %2000 = vst [vmem:[#allocation2 + $0x30] sm:$0xff] %v1984
        %2001 = vst [vmem:[#allocation2 + $0x38] sm:$0xff] %v1985
        %2002 = vst [vmem:[#allocation2 + $0x40] sm:$0xff] %v1986
        %2003 = vst [vmem:[#allocation2 + $0x48] sm:$0xff] %v1987
        %2004 = vst [vmem:[#allocation2 + $0x50] sm:$0xff] %v1988
        %2005 = vst [vmem:[#allocation2 + $0x58] sm:$0xff] %v1989
        %2006 = vst [vmem:[#allocation2 + $0x60] sm:$0xff] %v1990
        %2007 = vst [vmem:[#allocation2 + $0x68] sm:$0xff] %v1991
        %2008 = vst [vmem:[#allocation2 + $0x70] sm:$0xff] %v1992
        %2009 = vst [vmem:[#allocation2 + $0x78] sm:$0xff] %v1993
        // Predicated region
        $region33: #{tpu_custom_call.1} parent=27 // pred_check
          %p2010 = pneg %p93
        $region34: #{tpu_custom_call.1} parent=27 // pred_check_branch
          %2012 = sbr.rel (%p2010) target = $region36
        $region35: #{tpu_custom_call.1} parent=27 // pred_region
          %s2014 = ssub.s32 2048, 2048
          %2015 = vsyncadd [#allocation3], %s2014
          %s2016 = smul.addr %s18, 16
          %s2017 = smul.addr %s2016, 128
          %s2018 = scalar_lea.hbm %s2, %s2017
          %s2019 = sshll.u32 [#allocation2], 4
          %s2020 = int_to_ptr.vmem [resolvable:$true] %s2019
          %2025 = dma.vmem_to_hbm [thread:$0]  %s2020, 2048, %s2018, [#allocation3], 128, 128, 8
        $region36: #{tpu_custom_call.1} parent=27 // pred_fallthru
          _
        // Predicated region
        $region37: #{tpu_custom_call.1} parent=27 // pred_check
          %p2026 = pneg %p93
        $region38: #{tpu_custom_call.1} parent=27 // pred_check_branch
          %2028 = sbr.rel (%p2026) target = $region40
        $region39: #{tpu_custom_call.1} parent=27 // pred_region
          %2029 = dma.done [#allocation3], 2048
        $region40: #{tpu_custom_call.1} parent=27 // pred_fallthru
          _
      $region28: #{tpu_custom_call.1} parent=5 // pred_fallthru
        _
      %p2030 = scmp.le.s32.totalorder 2, %s9
      // Predicated region
      $region41: #{tpu_custom_call.1} parent=5 // pred_check
        %p2031 = pneg %p2030
      $region42: #{tpu_custom_call.1} parent=5 // pred_check_branch
        %2033 = sbr.rel (%p2031) target = $region44
      $region43: #{tpu_custom_call.1} parent=5 // pred_region
        %s2034 = ssub.s32 %s9, 2
      $region44: #{tpu_custom_call.1} parent=5 // pred_fallthru
        _
    $region6: #{tpu_custom_call.1} parent=1 // loop_footer
      %s13 = sadd.s32 1, %s9
    $region7: #{tpu_custom_call.1} parent=1 // loop_footer_branch
      %8 = sbr.rel target = $region3
    $region8: #{tpu_custom_call.1} parent=1 // loop_exit
      _
    %2035 = vsyncpa [#allocation3], 1
    %s2036 = scalar_lea.sflag [#allocation3], 1
    %2037 = vsyncpa %s2036, 1

</llo_original>
